<compile_context>
chip_gen: v7x
topology: tpu7x:2x2x1
jax: 0.10.0
libtpu: 0.0.40
codegen_flags: <defaults>
</compile_context>

<pallas_src>
import math

import jax
import jax.numpy as jnp
from jax.experimental import pallas as pl
from jax.experimental.pallas import tpu as pltpu

# Keep f32 matmuls (reference and kernel) at full precision so the numeric check is tight.
jax.config.update("jax_default_matmul_precision", "highest")

SQRT2 = math.sqrt(2.0)
NEG_SLOPE = 0.2
LANE = 128
SUBLANE = 8


def _round_up(v, m):
    return ((v + m - 1) // m) * m


def _leaky_relu(z):
    # fused_leaky_relu's sqrt(2) gain is pre-folded into the weights/biases
    # (positive homogeneity makes that exact), so this is just the max-form
    # leaky ReLU: 2 VALU ops instead of cmp + select + mul.
    return jnp.maximum(z, NEG_SLOPE * z)


# ---------------------------------------------------------------------------
# Kernel
# ---------------------------------------------------------------------------
def concat_squash_kernel(
    x_ref,        # (TM, dim_in)
    ctx_ref,      # (TM, dim_ctx)
    wl_ref,       # (dim_in, dop)          _layer weight (scale*sqrt2 folded, padded)
    bl_ref,       # (1, dop)               _layer bias   (lr_mul*sqrt2 folded, padded)
    wgb_ref,      # (dim_ctx, 2*dop)       [hyper_gate | hyper_bias] fused weights
    bgb_ref,      # (1, 2*dop)             fused biases
    o_ref,        # (TM, dop)
):
    dop = wl_ref.shape[-1]

    # _layer(x): EqualLinear with fused_lrelu activation (sqrt2 already folded in).
    h = jnp.dot(x_ref[...], wl_ref[...], preferred_element_type=jnp.float32)
    h = _leaky_relu(h + bl_ref[...])

    # Fused ctx path: one matmul produces [gate_logits | bias] side by side.
    gb = jnp.dot(ctx_ref[...], wgb_ref[...], preferred_element_type=jnp.float32)
    gb = _leaky_relu(gb + bgb_ref[...])

    # dop is a multiple of 128, so this lane split never crosses an (8,128) tile.
    g = gb[:, :dop]
    b = gb[:, dop:]

    gate = jax.nn.sigmoid(g)  # single EUP transcendental, exact numerics

    o_ref[...] = (h * gate + b).astype(o_ref.dtype)


# ---------------------------------------------------------------------------
# Parameters (mirrors EqualLinear.__init__) and one-time folding / padding
# ---------------------------------------------------------------------------
def make_equal_linear_params(key, dim_in, dim_out, lr_mul=0.01, bias_init=0.0):
    """Deterministic init mirroring EqualLinear.__init__ (weight stored as (out, in))."""
    w = jax.random.normal(key, (dim_out, dim_in), dtype=jnp.float32) / lr_mul
    b = jnp.full((dim_out,), bias_init, dtype=jnp.float32)
    scale = (1.0 / math.sqrt(dim_in)) * lr_mul
    return w, b, scale, lr_mul


def prepare_params(params, compute_dtype=jnp.float32):
    """One-time host-side prep: fold EqualLinear scale/lr_mul AND the fused_leaky_relu
    sqrt(2) gain, transpose to (in, out), pad dim_out to a lane multiple (zeros: the
    padded columns produce exact zeros through lrelu/bias so they are inert), and fuse
    hyper_gate/hyper_bias weights side by side."""
    (wl, bl, sl, ml), (wg, bg, sg, mg), (wb, bb, sb, mb) = params
    dim_out = wl.shape[0]
    dop = _round_up(dim_out, LANE)
    assert dop % LANE == 0  # gate|bias split and output stores stay lane-aligned
    pad = dop - dim_out

    def fold(w, b, s, m):
        wt = (w * (s * SQRT2)).T                   # (in, out), sqrt2 folded (exact)
        br = (b * (m * SQRT2)).reshape(1, -1)      # (1, out)
        wt = jnp.pad(wt, ((0, 0), (0, pad)))       # zero pad -> padded cols stay 0
        br = jnp.pad(br, ((0, 0), (0, pad)))
        return wt.astype(compute_dtype), br.astype(jnp.float32)

    wl_t, bl_r = fold(wl, bl, sl, ml)
    wg_t, bg_r = fold(wg, bg, sg, mg)
    wb_t, bb_r = fold(wb, bb, sb, mb)

    wgb = jnp.concatenate([wg_t, wb_t], axis=1)   # (dim_ctx, 2*dop)
    bgb = jnp.concatenate([bg_r, bb_r], axis=1)   # (1, 2*dop)
    return wl_t, bl_r, wgb, bgb, dim_out, dop


# ---------------------------------------------------------------------------
# Wrapper: batch-tiled, auto-pipelined pallas_call (no host-side padding)
# ---------------------------------------------------------------------------
def make_concat_squash_fn(params, tm=None, compute_dtype=jnp.float32):
    """Returns a jitted fwd(x, ctx) -> (B, dim_out) float32.

    `tm` optionally fixes the batch tile. `compute_dtype=jnp.bfloat16` halves weight /
    activation HBM traffic and MXU passes (biggest win on v5e/v6e); biases and the
    matmul accumulation stay f32."""
    wl_t, bl_r, wgb, bgb, dim_out, dop = prepare_params(params, compute_dtype)

    @jax.jit
    def fwd(x, ctx):
        B, dim_in = x.shape
        dim_ctx = ctx.shape[1]

        # Batch tile: large to amortize the ~0.35us/step pipeline overhead (VMEM is not
        # a constraint: double-buffered footprint at tile=1024 is only a few MB, far
        # under even v7x's 64 MiB). Keep >=2 grid steps for large batches so v7x's two
        # TensorCores both get work. Ragged last block is clipped by Pallas itself —
        # no host-side jnp.pad of x/ctx and no row slice on the output.
        if tm is not None:
            tile = max(1, min(tm, B))
            if tile < B:
                tile = _round_up(tile, SUBLANE)
        elif B <= 256:
            tile = B
        else:
            tile = min(1024, _round_up(pl.cdiv(B, 2), SUBLANE))
        grid = pl.cdiv(B, tile)

        if x.dtype != compute_dtype:
            x = x.astype(compute_dtype)
        if ctx.dtype != compute_dtype:
            ctx = ctx.astype(compute_dtype)

        out = pl.pallas_call(
            concat_squash_kernel,
            out_shape=jax.ShapeDtypeStruct((B, dop), jnp.float32),
            grid_spec=pltpu.PrefetchScalarGridSpec(
                num_scalar_prefetch=0,
                grid=(grid,),
                in_specs=[
                    pl.BlockSpec((tile, dim_in), lambda i: (i, 0)),      # x tile
                    pl.BlockSpec((tile, dim_ctx), lambda i: (i, 0)),     # ctx tile
                    pl.BlockSpec((dim_in, dop), lambda i: (0, 0)),       # layer W (resident)
                    pl.BlockSpec((1, dop), lambda i: (0, 0)),            # layer b (resident)
                    pl.BlockSpec((dim_ctx, 2 * dop), lambda i: (0, 0)),  # fused gate|bias W
                    pl.BlockSpec((1, 2 * dop), lambda i: (0, 0)),        # fused gate|bias b
                ],
                out_specs=pl.BlockSpec((tile, dop), lambda i: (i, 0)),
            ),
            compiler_params=pltpu.CompilerParams(
                dimension_semantics=("parallel",),
            ),
        )(x, ctx, wl_t, bl_r, wgb, bgb)

        # dop == dim_out whenever dim_out is already a multiple of 128 (the common
        # mapper width), so this slice only exists for non-lane-aligned widths.
        return out if dop == dim_out else out[:, :dim_out]

    return fwd


# ---------------------------------------------------------------------------
# Pure-JAX reference of the PyTorch forward, for verification
# ---------------------------------------------------------------------------
def reference(x, ctx, params):
    def eq_lin(inp, w, b, scale, lr_mul):
        z = inp @ (w * scale).T
        z = z + (b * lr_mul)[None, :]
        return jnp.where(z >= 0, z, NEG_SLOPE * z) * SQRT2

    (wl, bl, sl, ml), (wg, bg, sg, mg), (wb, bb, sb, mb) = params
    gate = jax.nn.sigmoid(eq_lin(ctx, wg, bg, sg, mg))
    bias = eq_lin(ctx, wb, bb, sb, mb)
    return eq_lin(x, wl, bl, sl, ml) * gate + bias


if __name__ == "__main__":
    B, DIM_IN, DIM_OUT, DIM_CTX = 64, 32, 64, 16

    key = jax.random.PRNGKey(0)
    kx, kc, k1, k2, k3 = jax.random.split(key, 5)

    x = jax.random.normal(kx, (B, DIM_IN), dtype=jnp.float32)
    ctx = jax.random.normal(kc, (B, DIM_CTX), dtype=jnp.float32)

    params = (
        make_equal_linear_params(k1, DIM_IN, DIM_OUT),   # _layer
        make_equal_linear_params(k2, DIM_CTX, DIM_OUT),  # _hyper_gate
        make_equal_linear_params(k3, DIM_CTX, DIM_OUT),  # _hyper_bias
    )

    ref = reference(x, ctx, params)

    # f32 path: small batch tile to exercise a multi-step grid at this toy size.
    fwd = make_concat_squash_fn(params, tm=16)
    out = jax.block_until_ready(fwd(x, ctx))
    assert out.shape == (B, DIM_OUT)
    assert jnp.allclose(out, ref, atol=1e-3, rtol=1e-3), "f32 kernel mismatch vs reference"

    # bf16 compute path (HBM / MXU-pass saver for v5e/v6e); loose check (bf16 rounding).
    fwd_bf16 = make_concat_squash_fn(params, tm=16, compute_dtype=jnp.bfloat16)
    out_bf16 = jax.block_until_ready(
        fwd_bf16(x.astype(jnp.bfloat16), ctx.astype(jnp.bfloat16)))
    assert out_bf16.shape == (B, DIM_OUT)
    assert jnp.allclose(out_bf16, ref, atol=1e-1, rtol=1e-1), "bf16 kernel mismatch vs reference"

    print("KERNEL_OK")
</pallas_src>

<mosaic_0001>
module attributes {stable_mosaic.version = 11 : i64} {
  func.func @concat_squash_kernel(%arg0: i32, %arg1: memref<16x32xf32, #tpu.memory_space<vmem>>, %arg2: memref<16x16xf32, #tpu.memory_space<vmem>>, %arg3: memref<32x128xf32, #tpu.memory_space<vmem>>, %arg4: memref<1x128xf32, #tpu.memory_space<vmem>>, %arg5: memref<16x256xf32, #tpu.memory_space<vmem>>, %arg6: memref<1x256xf32, #tpu.memory_space<vmem>>, %arg7: memref<16x128xf32, #tpu.memory_space<vmem>>) attributes {dimension_semantics = [#tpu.dimension_semantics<parallel>], iteration_bounds = array<i64: 4>, scalar_prefetch = 0 : i64, scratch_operands = 0 : i64, tpu.core_type = #tpu.core_type<tc>, window_params = [{transform_indices = @transform_0, window_bounds = array<i64: 16, 32>}, {transform_indices = @transform_1, window_bounds = array<i64: 16, 16>}, {pipeline_mode = #tpu.pipeline_mode<synchronous>, transform_indices = @transform_2, window_bounds = array<i64: 32, 128>}, {pipeline_mode = #tpu.pipeline_mode<synchronous>, transform_indices = @transform_3, window_bounds = array<i64: 1, 128>}, {pipeline_mode = #tpu.pipeline_mode<synchronous>, transform_indices = @transform_4, window_bounds = array<i64: 16, 256>}, {pipeline_mode = #tpu.pipeline_mode<synchronous>, transform_indices = @transform_5, window_bounds = array<i64: 1, 256>}, {transform_indices = @transform_6, window_bounds = array<i64: 16, 128>}]} {
    %c0 = arith.constant 0 : index
    %c0_0 = arith.constant 0 : index
    %0 = vector.load %arg1[%c0, %c0_0] : memref<16x32xf32, #tpu.memory_space<vmem>>, vector<16x32xf32>
    %c0_1 = arith.constant 0 : index
    %c0_2 = arith.constant 0 : index
    %1 = vector.load %arg3[%c0_1, %c0_2] : memref<32x128xf32, #tpu.memory_space<vmem>>, vector<32x128xf32>
    %cst = arith.constant dense<0.000000e+00> : vector<16x128xf32>
    %2 = tpu.matmul %0, %1, %cst {dimension_numbers = #tpu.dot_dimension_numbers<[1], [0], [0], [1], [0, 0, 1, 1], [], []>, precision = #tpu.contract_precision<fp32>} : vector<16x32xf32>, vector<32x128xf32>, vector<16x128xf32> -> vector<16x128xf32>
    %c0_3 = arith.constant 0 : index
    %c0_4 = arith.constant 0 : index
    %3 = vector.load %arg4[%c0_3, %c0_4] : memref<1x128xf32, #tpu.memory_space<vmem>>, vector<1x128xf32>
    %4 = vector.broadcast %3 : vector<1x128xf32> to vector<16x128xf32>
    %5 = arith.addf %2, %4 : vector<16x128xf32>
    %cst_5 = arith.constant 2.000000e-01 : f32
    %6 = vector.broadcast %cst_5 : f32 to vector<16x128xf32>
    %7 = arith.mulf %6, %5 : vector<16x128xf32>
    %8 = arith.maximumf %5, %7 : vector<16x128xf32>
    %c0_6 = arith.constant 0 : index
    %c0_7 = arith.constant 0 : index
    %9 = vector.load %arg2[%c0_6, %c0_7] : memref<16x16xf32, #tpu.memory_space<vmem>>, vector<16x16xf32>
    %c0_8 = arith.constant 0 : index
    %c0_9 = arith.constant 0 : index
    %10 = vector.load %arg5[%c0_8, %c0_9] : memref<16x256xf32, #tpu.memory_space<vmem>>, vector<16x256xf32>
    %cst_10 = arith.constant dense<0.000000e+00> : vector<16x256xf32>
    %11 = tpu.matmul %9, %10, %cst_10 {dimension_numbers = #tpu.dot_dimension_numbers<[1], [0], [0], [1], [0, 0, 1, 1], [], []>, precision = #tpu.contract_precision<fp32>} : vector<16x16xf32>, vector<16x256xf32>, vector<16x256xf32> -> vector<16x256xf32>
    %c0_11 = arith.constant 0 : index
    %c0_12 = arith.constant 0 : index
    %12 = vector.load %arg6[%c0_11, %c0_12] : memref<1x256xf32, #tpu.memory_space<vmem>>, vector<1x256xf32>
    %13 = vector.broadcast %12 : vector<1x256xf32> to vector<16x256xf32>
    %14 = arith.addf %11, %13 : vector<16x256xf32>
    %cst_13 = arith.constant 2.000000e-01 : f32
    %15 = vector.broadcast %cst_13 : f32 to vector<16x256xf32>
    %16 = arith.mulf %15, %14 : vector<16x256xf32>
    %17 = arith.maximumf %14, %16 : vector<16x256xf32>
    %18 = vector.extract_strided_slice %17 {offsets = [0, 0], sizes = [16, 128], strides = [1, 1]} : vector<16x256xf32> to vector<16x128xf32>
    %19 = vector.extract_strided_slice %17 {offsets = [0, 128], sizes = [16, 128], strides = [1, 1]} : vector<16x256xf32> to vector<16x128xf32>
    %20 = arith.negf %18 : vector<16x128xf32>
    %21 = math.exp %20 : vector<16x128xf32>
    %cst_14 = arith.constant 1.000000e+00 : f32
    %22 = vector.broadcast %cst_14 : f32 to vector<16x128xf32>
    %23 = arith.addf %22, %21 : vector<16x128xf32>
    %24 = arith.divf %22, %23 : vector<16x128xf32>
    %25 = arith.mulf %8, %24 : vector<16x128xf32>
    %26 = arith.addf %25, %19 : vector<16x128xf32>
    %c0_15 = arith.constant 0 : index
    %c0_16 = arith.constant 0 : index
    %27 = vector.load %arg7[%c0_15, %c0_16] : memref<16x128xf32, #tpu.memory_space<vmem>>, vector<16x128xf32>
    tpu.vector_store %arg7[%c0_15, %c0_16], %26 {strides = array<i32>} : memref<16x128xf32, #tpu.memory_space<vmem>>, vector<16x128xf32>,
    return
  }
  func.func @transform_0(%arg0: i32) -> (i32, i32) {
    %c0_i32 = arith.constant 0 : i32
    %c0_i32_0 = arith.constant 0 : i32
    return %arg0, %c0_i32 : i32, i32
  }
  func.func @transform_1(%arg0: i32) -> (i32, i32) {
    %c0_i32 = arith.constant 0 : i32
    %c0_i32_0 = arith.constant 0 : i32
    return %arg0, %c0_i32 : i32, i32
  }
  func.func @transform_2(%arg0: i32) -> (i32, i32) {
    %c0_i32 = arith.constant 0 : i32
    %c0_i32_0 = arith.constant 0 : i32
    %c0_i32_1 = arith.constant 0 : i32
    return %c0_i32, %c0_i32_0 : i32, i32
  }
  func.func @transform_3(%arg0: i32) -> (i32, i32) {
    %c0_i32 = arith.constant 0 : i32
    %c0_i32_0 = arith.constant 0 : i32
    %c0_i32_1 = arith.constant 0 : i32
    return %c0_i32, %c0_i32_0 : i32, i32
  }
  func.func @transform_4(%arg0: i32) -> (i32, i32) {
    %c0_i32 = arith.constant 0 : i32
    %c0_i32_0 = arith.constant 0 : i32
    %c0_i32_1 = arith.constant 0 : i32
    return %c0_i32, %c0_i32_0 : i32, i32
  }
  func.func @transform_5(%arg0: i32) -> (i32, i32) {
    %c0_i32 = arith.constant 0 : i32
    %c0_i32_0 = arith.constant 0 : i32
    %c0_i32_1 = arith.constant 0 : i32
    return %c0_i32, %c0_i32_0 : i32, i32
  }
  func.func @transform_6(%arg0: i32) -> (i32, i32) {
    %c0_i32 = arith.constant 0 : i32
    %c0_i32_0 = arith.constant 0 : i32
    return %arg0, %c0_i32 : i32, i32
  }
}

</mosaic_0001>

<llo_original>
// kernel: fwd.1
$region0: #{fwd.1}
  #allocation0 [shape = 'u32[]', space=smem, size = 0x4, offset = 0x4, fixed_abs, tag = 'smem constant byte address 0x4 - core index']
  #allocation1 [shape = 'u32[144,128]{1,0:T(1,128)}', space=vmem, size = 0x12000, scoped, tag = 'internal scratch']
  %s0 = inlined_call_operand.vmem [shape: f32[64,32], index: 0, kind: input, shape index: {}]
  %s1 = inlined_call_operand.vmem [shape: f32[64,16], index: 1, kind: input, shape index: {}]
  %s2 = inlined_call_operand.vmem [shape: f32[32,128], index: 2, kind: input, shape index: {}]
  %s3 = inlined_call_operand.vmem [shape: f32[1,128], index: 3, kind: input, shape index: {}]
  %s4 = inlined_call_operand.vmem [shape: f32[16,256], index: 4, kind: input, shape index: {}]
  %s5 = inlined_call_operand.vmem [shape: f32[1,256], index: 5, kind: input, shape index: {}]
  %s6 = inlined_call_operand.hbm [shape: f32[64,128], index: 6, kind: output, shape index: {}]
  %s7 = sld [smem:[#allocation0]]
  $region57: #{fwd.1} parent=0
    _
  %s9 = ssub.s32 1, %s7
  %s10 = scalar_select 0, %s9, %s7
  $region1: #{fwd.1} parent=0
    #allocation2 [shape = 'u8[16384]{0}', space=vmem, size = 0x4000, scoped, tag = 'output window, operand 0']
    #allocation3 [shape = 's32[2]{0}', space=sflag, size = 0x8, scoped, tag = 'scoped memory for fwd.1']
    %11 = vsyncpa [#allocation3], 0
    %s12 = scalar_lea.sflag [#allocation3], 1
    %13 = vsyncpa %s12, 0
    loop: start=0, step=1, limit=6
    $region2: #{fwd.1} parent=1 // loop_pre_header
      _
    $region3: #{fwd.1} parent=1 // loop_header
      %s15 = sphi 0, %s19
      %p16 = scmp.ge.s32.totalorder %s15, 6
      %s25 = sphi 0, %s27
      %s28 = sphi 0, %s25
      %s29 = sphi 0, %s28
      %s45 = sphi 0, %s29
      %s51 = sphi 0, %s53
      %s54 = sphi 0, %s51
      %s55 = sphi 0, %s54
      %s71 = sphi 0, %s55
      %s75 = sphi 0, %s75
      %s77 = sphi 0, %s75
      %s78 = sphi 0, %s77
      %s92 = sphi 0, %s78
      %s96 = sphi 0, %s96
      %s98 = sphi 0, %s96
      %s99 = sphi 0, %s98
      %s113 = sphi 0, %s99
      %s117 = sphi 0, %s117
      %s119 = sphi 0, %s117
      %s120 = sphi 0, %s119
      %s134 = sphi 0, %s120
      %s138 = sphi 0, %s138
      %s140 = sphi 0, %s138
      %s141 = sphi 0, %s140
      %s155 = sphi 0, %s141
      %s161 = sphi 0, %s163
      %s164 = sphi 0, %s161
      %s165 = sphi 0, %s164
      %s181 = sphi 0, %s165
    $region4: #{fwd.1} parent=1 // loop_header_branch
      %18 = sbr.rel (%p16) target = $region8
    $region5: #{fwd.1} parent=1 // loop_body
      %s20 = ssub.s32 %s15, 1
      %s21 = ssub.s32 %s15, 2
      %s22 = sadd.s32 %s15, 1
      %s23 = ssub.s32 %s15, %s22
      %p24 = scmp.eq.s32.totalorder %s23, 0
      %s26 = sadd.s32 %s25, 1
      %s27 = scalar_select %p24, %s25, %s26
      %p30 = pneg %p24
      %p31 = scmp.eq.s32.totalorder %s15, 3
      %p32 = por %p30, %p31
      %p33 = scmp.ne.s32.totalorder %s25, %s28
      %p34 = scmp.eq.s32.totalorder %s15, 0
      %p35 = por %p33, %p34
      %p36 = scmp.ne.s32.totalorder %s25, %s28
      %p37 = scmp.eq.s32.totalorder %s20, 3
      %p38 = por %p36, %p37
      %p39 = scmp.ne.s32.totalorder %s28, %s29
      %p40 = scmp.eq.s32.totalorder %s20, 0
      %p41 = por %p39, %p40
      %p42 = scmp.ne.s32.totalorder %s28, %s29
      %p43 = scmp.eq.s32.totalorder %s21, 3
      %p44 = por %p42, %p43
      %p46 = scmp.ne.s32.totalorder %s29, %s45
      %p47 = scmp.eq.s32.totalorder %s21, 0
      %p48 = por %p46, %p47
      %s49 = ssub.s32 %s15, %s22
      %p50 = scmp.eq.s32.totalorder %s49, 0
      %s52 = sadd.s32 %s51, 1
      %s53 = scalar_select %p50, %s51, %s52
      %p56 = pneg %p50
      %p57 = scmp.eq.s32.totalorder %s15, 3
      %p58 = por %p56, %p57
      %p59 = scmp.ne.s32.totalorder %s51, %s54
      %p60 = scmp.eq.s32.totalorder %s15, 0
      %p61 = por %p59, %p60
      %p62 = scmp.ne.s32.totalorder %s51, %s54
      %p63 = scmp.eq.s32.totalorder %s20, 3
      %p64 = por %p62, %p63
      %p65 = scmp.ne.s32.totalorder %s54, %s55
      %p66 = scmp.eq.s32.totalorder %s20, 0
      %p67 = por %p65, %p66
      %p68 = scmp.ne.s32.totalorder %s54, %s55
      %p69 = scmp.eq.s32.totalorder %s21, 3
      %p70 = por %p68, %p69
      %p72 = scmp.ne.s32.totalorder %s55, %s71
      %p73 = scmp.eq.s32.totalorder %s21, 0
      %p74 = por %p72, %p73
      %s76 = sadd.s32 %s75, 1
      %p79 = scmp.eq.s32.totalorder %s15, 3
      %p80 = scmp.ne.s32.totalorder %s75, %s77
      %p81 = scmp.eq.s32.totalorder %s15, 0
      %p82 = por %p80, %p81
      %p83 = scmp.ne.s32.totalorder %s75, %s77
      %p84 = scmp.eq.s32.totalorder %s20, 3
      %p85 = por %p83, %p84
      %p86 = scmp.ne.s32.totalorder %s77, %s78
      %p87 = scmp.eq.s32.totalorder %s20, 0
      %p88 = por %p86, %p87
      %p89 = scmp.ne.s32.totalorder %s77, %s78
      %p90 = scmp.eq.s32.totalorder %s21, 3
      %p91 = por %p89, %p90
      %p93 = scmp.ne.s32.totalorder %s78, %s92
      %p94 = scmp.eq.s32.totalorder %s21, 0
      %p95 = por %p93, %p94
      %s97 = sadd.s32 %s96, 1
      %p100 = scmp.eq.s32.totalorder %s15, 3
      %p101 = scmp.ne.s32.totalorder %s96, %s98
      %p102 = scmp.eq.s32.totalorder %s15, 0
      %p103 = por %p101, %p102
      %p104 = scmp.ne.s32.totalorder %s96, %s98
      %p105 = scmp.eq.s32.totalorder %s20, 3
      %p106 = por %p104, %p105
      %p107 = scmp.ne.s32.totalorder %s98, %s99
      %p108 = scmp.eq.s32.totalorder %s20, 0
      %p109 = por %p107, %p108
      %p110 = scmp.ne.s32.totalorder %s98, %s99
      %p111 = scmp.eq.s32.totalorder %s21, 3
      %p112 = por %p110, %p111
      %p114 = scmp.ne.s32.totalorder %s99, %s113
      %p115 = scmp.eq.s32.totalorder %s21, 0
      %p116 = por %p114, %p115
      %s118 = sadd.s32 %s117, 1
      %p121 = scmp.eq.s32.totalorder %s15, 3
      %p122 = scmp.ne.s32.totalorder %s117, %s119
      %p123 = scmp.eq.s32.totalorder %s15, 0
      %p124 = por %p122, %p123
      %p125 = scmp.ne.s32.totalorder %s117, %s119
      %p126 = scmp.eq.s32.totalorder %s20, 3
      %p127 = por %p125, %p126
      %p128 = scmp.ne.s32.totalorder %s119, %s120
      %p129 = scmp.eq.s32.totalorder %s20, 0
      %p130 = por %p128, %p129
      %p131 = scmp.ne.s32.totalorder %s119, %s120
      %p132 = scmp.eq.s32.totalorder %s21, 3
      %p133 = por %p131, %p132
      %p135 = scmp.ne.s32.totalorder %s120, %s134
      %p136 = scmp.eq.s32.totalorder %s21, 0
      %p137 = por %p135, %p136
      %s139 = sadd.s32 %s138, 1
      %p142 = scmp.eq.s32.totalorder %s15, 3
      %p143 = scmp.ne.s32.totalorder %s138, %s140
      %p144 = scmp.eq.s32.totalorder %s15, 0
      %p145 = por %p143, %p144
      %p146 = scmp.ne.s32.totalorder %s138, %s140
      %p147 = scmp.eq.s32.totalorder %s20, 3
      %p148 = por %p146, %p147
      %p149 = scmp.ne.s32.totalorder %s140, %s141
      %p150 = scmp.eq.s32.totalorder %s20, 0
      %p151 = por %p149, %p150
      %p152 = scmp.ne.s32.totalorder %s140, %s141
      %p153 = scmp.eq.s32.totalorder %s21, 3
      %p154 = por %p152, %p153
      %p156 = scmp.ne.s32.totalorder %s141, %s155
      %p157 = scmp.eq.s32.totalorder %s21, 0
      %p158 = por %p156, %p157
      %s159 = ssub.s32 %s15, %s22
      %p160 = scmp.eq.s32.totalorder %s159, 0
      %s162 = sadd.s32 %s161, 1
      %s163 = scalar_select %p160, %s161, %s162
      %p166 = pneg %p160
      %p167 = scmp.eq.s32.totalorder %s15, 3
      %p168 = por %p166, %p167
      %p169 = scmp.ne.s32.totalorder %s161, %s164
      %p170 = scmp.eq.s32.totalorder %s15, 0
      %p171 = por %p169, %p170
      %p172 = scmp.ne.s32.totalorder %s161, %s164
      %p173 = scmp.eq.s32.totalorder %s20, 3
      %p174 = por %p172, %p173
      %p175 = scmp.ne.s32.totalorder %s164, %s165
      %p176 = scmp.eq.s32.totalorder %s20, 0
      %p177 = por %p175, %p176
      %p178 = scmp.ne.s32.totalorder %s164, %s165
      %p179 = scmp.eq.s32.totalorder %s21, 3
      %p180 = por %p178, %p179
      %p182 = scmp.ne.s32.totalorder %s165, %s181
      %p183 = scmp.eq.s32.totalorder %s21, 0
      %p184 = por %p182, %p183
      %p185 = scmp.le.s32.totalorder 1, %s15
      %p186 = scmp.lt.s32.totalorder %s15, 5
      %p187 = pnand %p185, %p186
      %p188 = pneg %p187
      // Predicated region
      $region9: #{fwd.1} parent=5 // pred_check
        _
      $region10: #{fwd.1} parent=5 // pred_check_branch
        %190 = sbr.rel (%p187) target = $region12
      $region11: #{fwd.1} parent=5 // pred_region
        %s191 = ssub.s32 %s15, 1
        // Predicated region
        $region13: #{fwd.1} parent=11 // pred_check
          %p192 = pneg %p88
        $region14: #{fwd.1} parent=11 // pred_check_branch
          %194 = sbr.rel (%p192) target = $region16
        $region15: #{fwd.1} parent=11 // pred_region
          _
        $region16: #{fwd.1} parent=11 // pred_fallthru
          _
        // Predicated region
        $region17: #{fwd.1} parent=11 // pred_check
          %p195 = pneg %p109
        $region18: #{fwd.1} parent=11 // pred_check_branch
          %197 = sbr.rel (%p195) target = $region20
        $region19: #{fwd.1} parent=11 // pred_region
          _
        $region20: #{fwd.1} parent=11 // pred_fallthru
          _
        // Predicated region
        $region21: #{fwd.1} parent=11 // pred_check
          %p198 = pneg %p130
        $region22: #{fwd.1} parent=11 // pred_check_branch
          %200 = sbr.rel (%p198) target = $region24
        $region23: #{fwd.1} parent=11 // pred_region
          _
        $region24: #{fwd.1} parent=11 // pred_fallthru
          _
        // Predicated region
        $region25: #{fwd.1} parent=11 // pred_check
          %p201 = pneg %p151
        $region26: #{fwd.1} parent=11 // pred_check_branch
          %203 = sbr.rel (%p201) target = $region28
        $region27: #{fwd.1} parent=11 // pred_region
          _
        $region28: #{fwd.1} parent=11 // pred_fallthru
          _
      $region12: #{fwd.1} parent=5 // pred_fallthru
        _
      %p204 = scmp.lt.s32.totalorder %s15, 4
      // Predicated region
      $region29: #{fwd.1} parent=5 // pred_check
        %p205 = pneg %p204
      $region30: #{fwd.1} parent=5 // pred_check_branch
        %207 = sbr.rel (%p205) target = $region32
      $region31: #{fwd.1} parent=5 // pred_region
        // Predicated region
        $region33: #{fwd.1} parent=31 // pred_check
          %p208 = pneg %p35
        $region34: #{fwd.1} parent=31 // pred_check_branch
          %210 = sbr.rel (%p208) target = $region36
        $region35: #{fwd.1} parent=31 // pred_region
          %s211 = smul.u32 2, %s15
          %p212 = scmp.lt.s32.totalorder %s211, 7
          %s213 = scalar_select %p212, %s211, 7
          %s214 = smul.addr %s213, 8
          %s215 = scalar_lea.vmem %s0, %s214
          %s216 = smul.u32 2, %s15
        $region36: #{fwd.1} parent=31 // pred_fallthru
          _
        // Predicated region
        $region37: #{fwd.1} parent=31 // pred_check
          %p217 = pneg %p61
        $region38: #{fwd.1} parent=31 // pred_check_branch
          %219 = sbr.rel (%p217) target = $region40
        $region39: #{fwd.1} parent=31 // pred_region
          %s220 = smul.u32 2, %s15
          %p221 = scmp.lt.s32.totalorder %s220, 7
          %s222 = scalar_select %p221, %s220, 7
          %s223 = smul.addr %s222, 8
          %s224 = scalar_lea.vmem %s1, %s223
          %s225 = smul.u32 2, %s15
        $region40: #{fwd.1} parent=31 // pred_fallthru
          _
      $region32: #{fwd.1} parent=5 // pred_fallthru
        _
      %p226 = scmp.le.s32.totalorder 1, %s15
      %p227 = scmp.lt.s32.totalorder %s15, 5
      %p228 = pnand %p226, %p227
      %p229 = pneg %p228
      // Predicated region
      $region41: #{fwd.1} parent=5 // pred_check
        _
      $region42: #{fwd.1} parent=5 // pred_check_branch
        %231 = sbr.rel (%p228) target = $region44
      $region43: #{fwd.1} parent=5 // pred_region
        %s232 = ssub.s32 %s15, 1
        %s233 = smul.u32 2, %s20
        %p234 = scmp.lt.s32.totalorder %s233, 7
        %s235 = scalar_select %p234, %s233, 7
        %s236 = smul.addr %s235, 8
        %s237 = scalar_lea.vmem %s0, %s236
        %p238 = pneg %p41
        %p239 = pneg %p38
        %s240 = smul.u32 2, %s20
        %p241 = scmp.lt.s32.totalorder %s240, 7
        %s242 = scalar_select %p241, %s240, 7
        %s243 = smul.addr %s242, 8
        %s244 = scalar_lea.vmem %s1, %s243
        %p245 = pneg %p67
        %p246 = pneg %p64
        %p247 = pneg %p88
        %p248 = pneg %p85
        %p249 = pneg %p109
        %p250 = pneg %p106
        %p251 = pneg %p130
        %p252 = pneg %p127
        %p253 = pneg %p151
        %p254 = pneg %p148
        %p255 = pneg %p177
        %p256 = pneg %p174
        %s257 = sand.u32 %s164, 1
        %s258 = scalar_lea.sflag [#allocation3], %s257
        %s259 = sand.u32 %s164, 1
        %s260 = smul.addr %s259, 16
        %s261 = scalar_lea.vmem [#allocation2], %s260
        %s262 = smul.u32 2, %s20
        %p263 = scmp.lt.s32.totalorder %s262, 7
        %s264 = scalar_select %p263, %s262, 7
        %s265 = smul.addr %s264, 8
        %s266 = scalar_lea.vmem %s0, %s265
        %s267 = smul.u32 2, %s20
        %s268 = smul.u32 2, %s20
        %p269 = scmp.lt.s32.totalorder %s268, 7
        %s270 = scalar_select %p269, %s268, 7
        %s271 = smul.addr %s270, 8
        %s272 = scalar_lea.vmem %s1, %s271
        %s273 = smul.u32 2, %s20
        %s274 = smul.u32 2, %s20
        %v275 = vld [vmem:[%s266] sm:$0xff]
        %v276 = vld [vmem:[%s266 + $0x8] sm:$0xff]
        %v277 = vld [vmem:[%s2] sm:$0xff]
        %v278 = vld [vmem:[%s2 + $0x8] sm:$0xff]
        %v279 = vld [vmem:[%s2 + $0x10] sm:$0xff]
        %v280 = vld [vmem:[%s2 + $0x18] sm:$0xff]
        %v281 = vld [vmem:[%s3] sm:$0x1]
        %v283 = vlaneseq
        %v284 = vshrl.u32 %v283, 7
        %v285 = vsub.s32 0, %v284
        %v286 = vrot.slane %v281, %v285
        %vm288 = vcmask 261120
        %v290 = vsel %vm288, %v275, 0
        %v293 = vsel %vm288, %v276, 0
        %295 = vmatprep.subr.mxu0 0.0
        %v296 = vand.u32 %v277, 4294901760
        %297 = vmatpush1.msra.mxu0 %v296
        %298 = vmatprep.subr.mxu0 0.0
        %v299 = vand.u32 %v278, 4294901760
        %300 = vmatpush1.msra.mxu0 %v299
        %301 = vmatprep.subr.mxu0 0.0
        %v302 = vand.u32 %v279, 4294901760
        %303 = vmatpush1.msra.mxu0 %v302
        %304 = vmatprep.subr.mxu0 0.0
        %v305 = vand.u32 %v280, 4294901760
        %306 = vmatpush1.msra.mxu0 %v305
        %307 = vmatprep.subr.mxu0 0.0
        %308 = vmatpush1.msra.mxu0 0.0
        %309 = vmatprep.subr.mxu0 0.0
        %310 = vmatpush1.msra.mxu0 0.0
        %311 = vmatprep.subr.mxu0 0.0
        %312 = vmatpush1.msra.mxu0 0.0
        %313 = vmatprep.subr.mxu0 0.0
        %314 = vmatpush1.msra.mxu0 0.0
        %315 = vmatprep.subr.mxu0 0.0
        %316 = vmatpush1.msra.mxu0 0.0
        %317 = vmatprep.subr.mxu0 0.0
        %318 = vmatpush1.msra.mxu0 0.0
        %319 = vmatprep.subr.mxu0 0.0
        %320 = vmatpush1.msra.mxu0 0.0
        %321 = vmatprep.subr.mxu0 0.0
        %322 = vmatpush1.msra.mxu0 0.0
        %323 = vmatprep.subr.mxu0 0.0
        %324 = vmatpush1.msra.mxu0 0.0
        %325 = vmatprep.subr.mxu0 0.0
        %326 = vmatpush1.msra.mxu0 0.0
        %327 = vmatprep.subr.mxu0 0.0
        %328 = vmatpush1.msra.mxu0 0.0
        %329 = vmatprep.subr.mxu0 0.0
        %330 = vmatpush1.msra.mxu0 0.0
        %331 = vmatprep.subr.mxu0 0.0
        %332 = vmatpush1.msra.mxu0 0.0
        %333 = vmatprep.subr.mxu0 0.0
        %334 = vmatpush1.msra.mxu0 0.0
        %335 = vmatprep.subr.mxu0 0.0
        %336 = vmatpush1.msra.mxu0 0.0
        %337 = vmatprep.subr.mxu0 0.0
        %338 = vmatpush1.msra.mxu0 0.0
        %339 = vmatprep.subr.mxu0 0.0
        %340 = vmatpush1.msra.mxu0 0.0
        %341 = vmatprep.subr.mxu0 0.0
        %342 = vmatpush1.msra.mxu0 0.0
        %343 = vmatprep.subr.mxu0 0.0
        %344 = vmatpush1.msra.mxu0 0.0
        %345 = vmatprep.subr.mxu0 0.0
        %346 = vmatpush1.msra.mxu0 0.0
        %347 = vmatprep.subr.mxu0 0.0
        %348 = vmatpush1.msra.mxu0 0.0
        %349 = vmatprep.subr.mxu0 0.0
        %350 = vmatpush1.msra.mxu0 0.0
        %351 = vmatprep.subr.mxu0 0.0
        %352 = vmatpush1.msra.mxu0 0.0
        %353 = vmatprep.subr.mxu0 0.0
        %354 = vmatpush1.msra.mxu0 0.0
        %355 = vmatprep.subr.mxu0 0.0
        %356 = vmatpush1.msra.mxu0 0.0
        %357 = vmatprep.subr.mxu0 0.0
        %358 = vmatpush1.msra.mxu0 0.0
        %359 = vmatprep.subr.mxu0 0.0
        %360 = vmatpush1.msra.mxu0 0.0
        %361 = vmatprep.subr.mxu0 0.0
        %362 = vmatpush1.msra.mxu0 0.0
        %363 = vmatprep.mubr.f32.mxu0 0.0
        %v364 = vand.u32 %v290, 4294901760
        %v365 = vsub.f32 %v290, %v364
        %v366 = vand.u32 %v365, 4294901760
        %v367 = vsub.f32 %v365, %v366
        %v368 = vand.u32 %v367, 4294901760
        %369 = vmatmul.mubr.f32.gmra.mrb[0].mxu0 %v368
        %v370 = vpop.f32.mrb[0].mxu0
        %v371 = vadd.f32 %v286, %v370
        %v372 = vpop.f32.mrb[0].mxu0
        %373 = vmatprep.mubr.f32.mxu0 0.0
        %v374 = vand.u32 %v293, 4294901760
        %v375 = vsub.f32 %v293, %v374
        %v376 = vand.u32 %v375, 4294901760
        %v377 = vsub.f32 %v375, %v376
        %v378 = vand.u32 %v377, 4294901760
        %379 = vmatmul.mubr.f32.gmra.mrb[0].mxu0 %v378
        %v380 = vpop.f32.mrb[0].mxu0
        %v381 = vadd.f32 %v286, %v380
        %v382 = vpop.f32.mrb[0].mxu0
        %383 = vdwg.mxu0
        %384 = vmatprep.subr.mxu0 0.0
        %v385 = vand.u32 %v277, 4294901760
        %v386 = vsub.f32 %v277, %v385
        %v387 = vand.u32 %v386, 4294901760
        %v388 = vsub.f32 %v386, %v387
        %v389 = vand.u32 %v388, 4294901760
        %390 = vmatpush1.msra.mxu0 %v389
        %391 = vmatprep.subr.mxu0 0.0
        %v392 = vand.u32 %v278, 4294901760
        %v393 = vsub.f32 %v278, %v392
        %v394 = vand.u32 %v393, 4294901760
        %v395 = vsub.f32 %v393, %v394
        %v396 = vand.u32 %v395, 4294901760
        %397 = vmatpush1.msra.mxu0 %v396
        %398 = vmatprep.subr.mxu0 0.0
        %v399 = vand.u32 %v279, 4294901760
        %v400 = vsub.f32 %v279, %v399
        %v401 = vand.u32 %v400, 4294901760
        %v402 = vsub.f32 %v400, %v401
        %v403 = vand.u32 %v402, 4294901760
        %404 = vmatpush1.msra.mxu0 %v403
        %405 = vmatprep.subr.mxu0 0.0
        %v406 = vand.u32 %v280, 4294901760
        %v407 = vsub.f32 %v280, %v406
        %v408 = vand.u32 %v407, 4294901760
        %v409 = vsub.f32 %v407, %v408
        %v410 = vand.u32 %v409, 4294901760
        %411 = vmatpush1.msra.mxu0 %v410
        %412 = vmatprep.subr.mxu0 0.0
        %413 = vmatpush1.msra.mxu0 0.0
        %414 = vmatprep.subr.mxu0 0.0
        %415 = vmatpush1.msra.mxu0 0.0
        %416 = vmatprep.subr.mxu0 0.0
        %417 = vmatpush1.msra.mxu0 0.0
        %418 = vmatprep.subr.mxu0 0.0
        %419 = vmatpush1.msra.mxu0 0.0
        %420 = vmatprep.subr.mxu0 0.0
        %421 = vmatpush1.msra.mxu0 0.0
        %422 = vmatprep.subr.mxu0 0.0
        %423 = vmatpush1.msra.mxu0 0.0
        %424 = vmatprep.subr.mxu0 0.0
        %425 = vmatpush1.msra.mxu0 0.0
        %426 = vmatprep.subr.mxu0 0.0
        %427 = vmatpush1.msra.mxu0 0.0
        %428 = vmatprep.subr.mxu0 0.0
        %429 = vmatpush1.msra.mxu0 0.0
        %430 = vmatprep.subr.mxu0 0.0
        %431 = vmatpush1.msra.mxu0 0.0
        %432 = vmatprep.subr.mxu0 0.0
        %433 = vmatpush1.msra.mxu0 0.0
        %434 = vmatprep.subr.mxu0 0.0
        %435 = vmatpush1.msra.mxu0 0.0
        %436 = vmatprep.subr.mxu0 0.0
        %437 = vmatpush1.msra.mxu0 0.0
        %438 = vmatprep.subr.mxu0 0.0
        %439 = vmatpush1.msra.mxu0 0.0
        %440 = vmatprep.subr.mxu0 0.0
        %441 = vmatpush1.msra.mxu0 0.0
        %442 = vmatprep.subr.mxu0 0.0
        %443 = vmatpush1.msra.mxu0 0.0
        %444 = vmatprep.subr.mxu0 0.0
        %445 = vmatpush1.msra.mxu0 0.0
        %446 = vmatprep.subr.mxu0 0.0
        %447 = vmatpush1.msra.mxu0 0.0
        %448 = vmatprep.subr.mxu0 0.0
        %449 = vmatpush1.msra.mxu0 0.0
        %450 = vmatprep.subr.mxu0 0.0
        %451 = vmatpush1.msra.mxu0 0.0
        %452 = vmatprep.subr.mxu0 0.0
        %453 = vmatpush1.msra.mxu0 0.0
        %454 = vmatprep.subr.mxu0 0.0
        %455 = vmatpush1.msra.mxu0 0.0
        %456 = vmatprep.subr.mxu0 0.0
        %457 = vmatpush1.msra.mxu0 0.0
        %458 = vmatprep.subr.mxu0 0.0
        %459 = vmatpush1.msra.mxu0 0.0
        %460 = vmatprep.subr.mxu0 0.0
        %461 = vmatpush1.msra.mxu0 0.0
        %462 = vmatprep.subr.mxu0 0.0
        %463 = vmatpush1.msra.mxu0 0.0
        %464 = vmatprep.subr.mxu0 0.0
        %465 = vmatpush1.msra.mxu0 0.0
        %466 = vmatprep.subr.mxu0 0.0
        %467 = vmatpush1.msra.mxu0 0.0
        %468 = vmatprep.mubr.f32.mxu0 0.0
        %v469 = vand.u32 %v290, 4294901760
        %470 = vmatmul.mubr.f32.gmra.mrb[0].mxu0 %v469
        %v471 = vpop.f32.mrb[0].mxu0
        %v472 = vadd.f32 %v371, %v471
        %v473 = vpop.f32.mrb[0].mxu0
        %474 = vmatprep.mubr.f32.mxu0 0.0
        %v475 = vand.u32 %v293, 4294901760
        %476 = vmatmul.mubr.f32.gmra.mrb[0].mxu0 %v475
        %v477 = vpop.f32.mrb[0].mxu0
        %v478 = vadd.f32 %v381, %v477
        %v479 = vpop.f32.mrb[0].mxu0
        %480 = vdwg.mxu0
        %481 = vmatprep.subr.mxu0 0.0
        %v482 = vand.u32 %v277, 4294901760
        %v483 = vsub.f32 %v277, %v482
        %484 = vmatpush1.msra.mxu0 %v483
        %485 = vmatprep.subr.mxu0 0.0
        %v486 = vand.u32 %v278, 4294901760
        %v487 = vsub.f32 %v278, %v486
        %488 = vmatpush1.msra.mxu0 %v487
        %489 = vmatprep.subr.mxu0 0.0
        %v490 = vand.u32 %v279, 4294901760
        %v491 = vsub.f32 %v279, %v490
        %492 = vmatpush1.msra.mxu0 %v491
        %493 = vmatprep.subr.mxu0 0.0
        %v494 = vand.u32 %v280, 4294901760
        %v495 = vsub.f32 %v280, %v494
        %496 = vmatpush1.msra.mxu0 %v495
        %497 = vmatprep.subr.mxu0 0.0
        %498 = vmatpush1.msra.mxu0 0.0
        %499 = vmatprep.subr.mxu0 0.0
        %500 = vmatpush1.msra.mxu0 0.0
        %501 = vmatprep.subr.mxu0 0.0
        %502 = vmatpush1.msra.mxu0 0.0
        %503 = vmatprep.subr.mxu0 0.0
        %504 = vmatpush1.msra.mxu0 0.0
        %505 = vmatprep.subr.mxu0 0.0
        %506 = vmatpush1.msra.mxu0 0.0
        %507 = vmatprep.subr.mxu0 0.0
        %508 = vmatpush1.msra.mxu0 0.0
        %509 = vmatprep.subr.mxu0 0.0
        %510 = vmatpush1.msra.mxu0 0.0
        %511 = vmatprep.subr.mxu0 0.0
        %512 = vmatpush1.msra.mxu0 0.0
        %513 = vmatprep.subr.mxu0 0.0
        %514 = vmatpush1.msra.mxu0 0.0
        %515 = vmatprep.subr.mxu0 0.0
        %516 = vmatpush1.msra.mxu0 0.0
        %517 = vmatprep.subr.mxu0 0.0
        %518 = vmatpush1.msra.mxu0 0.0
        %519 = vmatprep.subr.mxu0 0.0
        %520 = vmatpush1.msra.mxu0 0.0
        %521 = vmatprep.subr.mxu0 0.0
        %522 = vmatpush1.msra.mxu0 0.0
        %523 = vmatprep.subr.mxu0 0.0
        %524 = vmatpush1.msra.mxu0 0.0
        %525 = vmatprep.subr.mxu0 0.0
        %526 = vmatpush1.msra.mxu0 0.0
        %527 = vmatprep.subr.mxu0 0.0
        %528 = vmatpush1.msra.mxu0 0.0
        %529 = vmatprep.subr.mxu0 0.0
        %530 = vmatpush1.msra.mxu0 0.0
        %531 = vmatprep.subr.mxu0 0.0
        %532 = vmatpush1.msra.mxu0 0.0
        %533 = vmatprep.subr.mxu0 0.0
        %534 = vmatpush1.msra.mxu0 0.0
        %535 = vmatprep.subr.mxu0 0.0
        %536 = vmatpush1.msra.mxu0 0.0
        %537 = vmatprep.subr.mxu0 0.0
        %538 = vmatpush1.msra.mxu0 0.0
        %539 = vmatprep.subr.mxu0 0.0
        %540 = vmatpush1.msra.mxu0 0.0
        %541 = vmatprep.subr.mxu0 0.0
        %542 = vmatpush1.msra.mxu0 0.0
        %543 = vmatprep.subr.mxu0 0.0
        %544 = vmatpush1.msra.mxu0 0.0
        %545 = vmatprep.subr.mxu0 0.0
        %546 = vmatpush1.msra.mxu0 0.0
        %547 = vmatprep.subr.mxu0 0.0
        %548 = vmatpush1.msra.mxu0 0.0
        %549 = vmatprep.subr.mxu0 0.0
        %550 = vmatpush1.msra.mxu0 0.0
        %551 = vmatprep.subr.mxu0 0.0
        %552 = vmatpush1.msra.mxu0 0.0
        %553 = vmatprep.mubr.f32.mxu0 0.0
        %v554 = vand.u32 %v290, 4294901760
        %v555 = vsub.f32 %v290, %v554
        %556 = vmatmul.mubr.f32.gmra.mrb[0].mxu0 %v555
        %v557 = vpop.f32.mrb[0].mxu0
        %v558 = vadd.f32 %v472, %v557
        %v559 = vpop.f32.mrb[0].mxu0
        %560 = vmatprep.mubr.f32.mxu0 0.0
        %v561 = vand.u32 %v293, 4294901760
        %v562 = vsub.f32 %v293, %v561
        %563 = vmatmul.mubr.f32.gmra.mrb[0].mxu0 %v562
        %v564 = vpop.f32.mrb[0].mxu0
        %v565 = vadd.f32 %v478, %v564
        %v566 = vpop.f32.mrb[0].mxu0
        %567 = vdwg.mxu0
        %568 = vmatprep.subr.mxu0 0.0
        %v569 = vand.u32 %v277, 4294901760
        %570 = vmatpush1.msra.mxu0 %v569
        %571 = vmatprep.subr.mxu0 0.0
        %v572 = vand.u32 %v278, 4294901760
        %573 = vmatpush1.msra.mxu0 %v572
        %574 = vmatprep.subr.mxu0 0.0
        %v575 = vand.u32 %v279, 4294901760
        %576 = vmatpush1.msra.mxu0 %v575
        %577 = vmatprep.subr.mxu0 0.0
        %v578 = vand.u32 %v280, 4294901760
        %579 = vmatpush1.msra.mxu0 %v578
        %580 = vmatprep.subr.mxu0 0.0
        %581 = vmatpush1.msra.mxu0 0.0
        %582 = vmatprep.subr.mxu0 0.0
        %583 = vmatpush1.msra.mxu0 0.0
        %584 = vmatprep.subr.mxu0 0.0
        %585 = vmatpush1.msra.mxu0 0.0
        %586 = vmatprep.subr.mxu0 0.0
        %587 = vmatpush1.msra.mxu0 0.0
        %588 = vmatprep.subr.mxu0 0.0
        %589 = vmatpush1.msra.mxu0 0.0
        %590 = vmatprep.subr.mxu0 0.0
        %591 = vmatpush1.msra.mxu0 0.0
        %592 = vmatprep.subr.mxu0 0.0
        %593 = vmatpush1.msra.mxu0 0.0
        %594 = vmatprep.subr.mxu0 0.0
        %595 = vmatpush1.msra.mxu0 0.0
        %596 = vmatprep.subr.mxu0 0.0
        %597 = vmatpush1.msra.mxu0 0.0
        %598 = vmatprep.subr.mxu0 0.0
        %599 = vmatpush1.msra.mxu0 0.0
        %600 = vmatprep.subr.mxu0 0.0
        %601 = vmatpush1.msra.mxu0 0.0
        %602 = vmatprep.subr.mxu0 0.0
        %603 = vmatpush1.msra.mxu0 0.0
        %604 = vmatprep.subr.mxu0 0.0
        %605 = vmatpush1.msra.mxu0 0.0
        %606 = vmatprep.subr.mxu0 0.0
        %607 = vmatpush1.msra.mxu0 0.0
        %608 = vmatprep.subr.mxu0 0.0
        %609 = vmatpush1.msra.mxu0 0.0
        %610 = vmatprep.subr.mxu0 0.0
        %611 = vmatpush1.msra.mxu0 0.0
        %612 = vmatprep.subr.mxu0 0.0
        %613 = vmatpush1.msra.mxu0 0.0
        %614 = vmatprep.subr.mxu0 0.0
        %615 = vmatpush1.msra.mxu0 0.0
        %616 = vmatprep.subr.mxu0 0.0
        %617 = vmatpush1.msra.mxu0 0.0
        %618 = vmatprep.subr.mxu0 0.0
        %619 = vmatpush1.msra.mxu0 0.0
        %620 = vmatprep.subr.mxu0 0.0
        %621 = vmatpush1.msra.mxu0 0.0
        %622 = vmatprep.subr.mxu0 0.0
        %623 = vmatpush1.msra.mxu0 0.0
        %624 = vmatprep.subr.mxu0 0.0
        %625 = vmatpush1.msra.mxu0 0.0
        %626 = vmatprep.subr.mxu0 0.0
        %627 = vmatpush1.msra.mxu0 0.0
        %628 = vmatprep.subr.mxu0 0.0
        %629 = vmatpush1.msra.mxu0 0.0
        %630 = vmatprep.subr.mxu0 0.0
        %631 = vmatpush1.msra.mxu0 0.0
        %632 = vmatprep.subr.mxu0 0.0
        %633 = vmatpush1.msra.mxu0 0.0
        %634 = vmatprep.subr.mxu0 0.0
        %635 = vmatpush1.msra.mxu0 0.0
        %636 = vmatprep.mubr.f32.mxu0 0.0
        %v637 = vand.u32 %v290, 4294901760
        %v638 = vsub.f32 %v290, %v637
        %v639 = vand.u32 %v638, 4294901760
        %640 = vmatmul.mubr.f32.gmra.mrb[0].mxu0 %v639
        %v641 = vpop.f32.mrb[0].mxu0
        %v642 = vadd.f32 %v558, %v641
        %v643 = vpop.f32.mrb[0].mxu0
        %644 = vmatprep.mubr.f32.mxu0 0.0
        %v645 = vand.u32 %v293, 4294901760
        %v646 = vsub.f32 %v293, %v645
        %v647 = vand.u32 %v646, 4294901760
        %648 = vmatmul.mubr.f32.gmra.mrb[0].mxu0 %v647
        %v649 = vpop.f32.mrb[0].mxu0
        %v650 = vadd.f32 %v565, %v649
        %v651 = vpop.f32.mrb[0].mxu0
        %652 = vdwg.mxu0
        %653 = vmatprep.subr.mxu0 0.0
        %v654 = vand.u32 %v277, 4294901760
        %v655 = vsub.f32 %v277, %v654
        %v656 = vand.u32 %v655, 4294901760
        %657 = vmatpush1.msra.mxu0 %v656
        %658 = vmatprep.subr.mxu0 0.0
        %v659 = vand.u32 %v278, 4294901760
        %v660 = vsub.f32 %v278, %v659
        %v661 = vand.u32 %v660, 4294901760
        %662 = vmatpush1.msra.mxu0 %v661
        %663 = vmatprep.subr.mxu0 0.0
        %v664 = vand.u32 %v279, 4294901760
        %v665 = vsub.f32 %v279, %v664
        %v666 = vand.u32 %v665, 4294901760
        %667 = vmatpush1.msra.mxu0 %v666
        %668 = vmatprep.subr.mxu0 0.0
        %v669 = vand.u32 %v280, 4294901760
        %v670 = vsub.f32 %v280, %v669
        %v671 = vand.u32 %v670, 4294901760
        %672 = vmatpush1.msra.mxu0 %v671
        %673 = vmatprep.subr.mxu0 0.0
        %674 = vmatpush1.msra.mxu0 0.0
        %675 = vmatprep.subr.mxu0 0.0
        %676 = vmatpush1.msra.mxu0 0.0
        %677 = vmatprep.subr.mxu0 0.0
        %678 = vmatpush1.msra.mxu0 0.0
        %679 = vmatprep.subr.mxu0 0.0
        %680 = vmatpush1.msra.mxu0 0.0
        %681 = vmatprep.subr.mxu0 0.0
        %682 = vmatpush1.msra.mxu0 0.0
        %683 = vmatprep.subr.mxu0 0.0
        %684 = vmatpush1.msra.mxu0 0.0
        %685 = vmatprep.subr.mxu0 0.0
        %686 = vmatpush1.msra.mxu0 0.0
        %687 = vmatprep.subr.mxu0 0.0
        %688 = vmatpush1.msra.mxu0 0.0
        %689 = vmatprep.subr.mxu0 0.0
        %690 = vmatpush1.msra.mxu0 0.0
        %691 = vmatprep.subr.mxu0 0.0
        %692 = vmatpush1.msra.mxu0 0.0
        %693 = vmatprep.subr.mxu0 0.0
        %694 = vmatpush1.msra.mxu0 0.0
        %695 = vmatprep.subr.mxu0 0.0
        %696 = vmatpush1.msra.mxu0 0.0
        %697 = vmatprep.subr.mxu0 0.0
        %698 = vmatpush1.msra.mxu0 0.0
        %699 = vmatprep.subr.mxu0 0.0
        %700 = vmatpush1.msra.mxu0 0.0
        %701 = vmatprep.subr.mxu0 0.0
        %702 = vmatpush1.msra.mxu0 0.0
        %703 = vmatprep.subr.mxu0 0.0
        %704 = vmatpush1.msra.mxu0 0.0
        %705 = vmatprep.subr.mxu0 0.0
        %706 = vmatpush1.msra.mxu0 0.0
        %707 = vmatprep.subr.mxu0 0.0
        %708 = vmatpush1.msra.mxu0 0.0
        %709 = vmatprep.subr.mxu0 0.0
        %710 = vmatpush1.msra.mxu0 0.0
        %711 = vmatprep.subr.mxu0 0.0
        %712 = vmatpush1.msra.mxu0 0.0
        %713 = vmatprep.subr.mxu0 0.0
        %714 = vmatpush1.msra.mxu0 0.0
        %715 = vmatprep.subr.mxu0 0.0
        %716 = vmatpush1.msra.mxu0 0.0
        %717 = vmatprep.subr.mxu0 0.0
        %718 = vmatpush1.msra.mxu0 0.0
        %719 = vmatprep.subr.mxu0 0.0
        %720 = vmatpush1.msra.mxu0 0.0
        %721 = vmatprep.subr.mxu0 0.0
        %722 = vmatpush1.msra.mxu0 0.0
        %723 = vmatprep.subr.mxu0 0.0
        %724 = vmatpush1.msra.mxu0 0.0
        %725 = vmatprep.subr.mxu0 0.0
        %726 = vmatpush1.msra.mxu0 0.0
        %727 = vmatprep.subr.mxu0 0.0
        %728 = vmatpush1.msra.mxu0 0.0
        %729 = vmatprep.mubr.f32.mxu0 0.0
        %v730 = vand.u32 %v290, 4294901760
        %731 = vmatmul.mubr.f32.gmra.mrb[0].mxu0 %v730
        %v732 = vpop.f32.mrb[0].mxu0
        %v733 = vadd.f32 %v642, %v732
        %v734 = vpop.f32.mrb[0].mxu0
        %735 = vmatprep.mubr.f32.mxu0 0.0
        %v736 = vand.u32 %v293, 4294901760
        %737 = vmatmul.mubr.f32.gmra.mrb[0].mxu0 %v736
        %v738 = vpop.f32.mrb[0].mxu0
        %v739 = vadd.f32 %v650, %v738
        %v740 = vpop.f32.mrb[0].mxu0
        %741 = vdwg.mxu0
        %742 = vmatprep.subr.mxu0 0.0
        %v743 = vand.u32 %v277, 4294901760
        %744 = vmatpush1.msra.mxu0 %v743
        %745 = vmatprep.subr.mxu0 0.0
        %v746 = vand.u32 %v278, 4294901760
        %747 = vmatpush1.msra.mxu0 %v746
        %748 = vmatprep.subr.mxu0 0.0
        %v749 = vand.u32 %v279, 4294901760
        %750 = vmatpush1.msra.mxu0 %v749
        %751 = vmatprep.subr.mxu0 0.0
        %v752 = vand.u32 %v280, 4294901760
        %753 = vmatpush1.msra.mxu0 %v752
        %754 = vmatprep.subr.mxu0 0.0
        %755 = vmatpush1.msra.mxu0 0.0
        %756 = vmatprep.subr.mxu0 0.0
        %757 = vmatpush1.msra.mxu0 0.0
        %758 = vmatprep.subr.mxu0 0.0
        %759 = vmatpush1.msra.mxu0 0.0
        %760 = vmatprep.subr.mxu0 0.0
        %761 = vmatpush1.msra.mxu0 0.0
        %762 = vmatprep.subr.mxu0 0.0
        %763 = vmatpush1.msra.mxu0 0.0
        %764 = vmatprep.subr.mxu0 0.0
        %765 = vmatpush1.msra.mxu0 0.0
        %766 = vmatprep.subr.mxu0 0.0
        %767 = vmatpush1.msra.mxu0 0.0
        %768 = vmatprep.subr.mxu0 0.0
        %769 = vmatpush1.msra.mxu0 0.0
        %770 = vmatprep.subr.mxu0 0.0
        %771 = vmatpush1.msra.mxu0 0.0
        %772 = vmatprep.subr.mxu0 0.0
        %773 = vmatpush1.msra.mxu0 0.0
        %774 = vmatprep.subr.mxu0 0.0
        %775 = vmatpush1.msra.mxu0 0.0
        %776 = vmatprep.subr.mxu0 0.0
        %777 = vmatpush1.msra.mxu0 0.0
        %778 = vmatprep.subr.mxu0 0.0
        %779 = vmatpush1.msra.mxu0 0.0
        %780 = vmatprep.subr.mxu0 0.0
        %781 = vmatpush1.msra.mxu0 0.0
        %782 = vmatprep.subr.mxu0 0.0
        %783 = vmatpush1.msra.mxu0 0.0
        %784 = vmatprep.subr.mxu0 0.0
        %785 = vmatpush1.msra.mxu0 0.0
        %786 = vmatprep.subr.mxu0 0.0
        %787 = vmatpush1.msra.mxu0 0.0
        %788 = vmatprep.subr.mxu0 0.0
        %789 = vmatpush1.msra.mxu0 0.0
        %790 = vmatprep.subr.mxu0 0.0
        %791 = vmatpush1.msra.mxu0 0.0
        %792 = vmatprep.subr.mxu0 0.0
        %793 = vmatpush1.msra.mxu0 0.0
        %794 = vmatprep.subr.mxu0 0.0
        %795 = vmatpush1.msra.mxu0 0.0
        %796 = vmatprep.subr.mxu0 0.0
        %797 = vmatpush1.msra.mxu0 0.0
        %798 = vmatprep.subr.mxu0 0.0
        %799 = vmatpush1.msra.mxu0 0.0
        %800 = vmatprep.subr.mxu0 0.0
        %801 = vmatpush1.msra.mxu0 0.0
        %802 = vmatprep.subr.mxu0 0.0
        %803 = vmatpush1.msra.mxu0 0.0
        %804 = vmatprep.subr.mxu0 0.0
        %805 = vmatpush1.msra.mxu0 0.0
        %806 = vmatprep.subr.mxu0 0.0
        %807 = vmatpush1.msra.mxu0 0.0
        %808 = vmatprep.subr.mxu0 0.0
        %809 = vmatpush1.msra.mxu0 0.0
        %810 = vmatprep.mubr.f32.mxu0 0.0
        %v811 = vand.u32 %v290, 4294901760
        %812 = vmatmul.mubr.f32.gmra.mrb[0].mxu0 %v811
        %v813 = vpop.f32.mrb[0].mxu0
        %v814 = vadd.f32 %v733, %v813
        %v815 = vpop.f32.mrb[0].mxu0
        %816 = vmatprep.mubr.f32.mxu0 0.0
        %v817 = vand.u32 %v293, 4294901760
        %818 = vmatmul.mubr.f32.gmra.mrb[0].mxu0 %v817
        %v819 = vpop.f32.mrb[0].mxu0
        %v820 = vadd.f32 %v739, %v819
        %v821 = vpop.f32.mrb[0].mxu0
        %822 = vdwg.mxu0
        %v823 = vmul.f32 %v814, 0.2
        %v824 = vmul.f32 %v820, 0.2
        %v825 = vmax.f32 %v814, %v823
        %v826 = vmax.f32 %v820, %v824
        %v827 = vld [vmem:[%s272] sm:$0xff]
        %v828 = vld [vmem:[%s272 + $0x8] sm:$0xff]
        %v829 = vld [vmem:[%s4] sm:$0xff]
        %v830 = vld [vmem:[%s4 + $0x8] sm:$0xff]
        %v831 = vld [vmem:[%s4 + $0x10] sm:$0xff]
        %v832 = vld [vmem:[%s4 + $0x18] sm:$0xff]
        %v833 = vld [vmem:[%s5] sm:$0x3]
        %v835 = vlaneseq
        %v836 = vshrl.u32 %v835, 7
        %v837 = vsub.s32 0, %v836
        %v838 = vrot.slane %v833, %v837
        %v839 = vlaneseq
        %v840 = vshrl.u32 %v839, 7
        %v841 = vsub.s32 1, %v840
        %v842 = vrot.slane %v833, %v841
        %vm845 = vcmask 130048
        %v847 = vsel %vm845, %v827, 0
        %v850 = vsel %vm845, %v828, 0
        %v852 = vand.u32 %v830, 4294901760
        %853 = vmatprep.subr.mxu0 %v852
        %v854 = vand.u32 %v829, 4294901760
        %855 = vmatpush1.msra.mxu0 %v854
        %v856 = vand.u32 %v832, 4294901760
        %857 = vmatprep.subr.mxu0 %v856
        %v858 = vand.u32 %v831, 4294901760
        %859 = vmatpush1.msra.mxu0 %v858
        %860 = vmatprep.subr.mxu0 0.0
        %861 = vmatpush1.msra.mxu0 0.0
        %862 = vmatprep.subr.mxu0 0.0
        %863 = vmatpush1.msra.mxu0 0.0
        %864 = vmatprep.subr.mxu0 0.0
        %865 = vmatpush1.msra.mxu0 0.0
        %866 = vmatprep.subr.mxu0 0.0
        %867 = vmatpush1.msra.mxu0 0.0
        %868 = vmatprep.subr.mxu0 0.0
        %869 = vmatpush1.msra.mxu0 0.0
        %870 = vmatprep.subr.mxu0 0.0
        %871 = vmatpush1.msra.mxu0 0.0
        %872 = vmatprep.subr.mxu0 0.0
        %873 = vmatpush1.msra.mxu0 0.0
        %874 = vmatprep.subr.mxu0 0.0
        %875 = vmatpush1.msra.mxu0 0.0
        %876 = vmatprep.subr.mxu0 0.0
        %877 = vmatpush1.msra.mxu0 0.0
        %878 = vmatprep.subr.mxu0 0.0
        %879 = vmatpush1.msra.mxu0 0.0
        %880 = vmatprep.subr.mxu0 0.0
        %881 = vmatpush1.msra.mxu0 0.0
        %882 = vmatprep.subr.mxu0 0.0
        %883 = vmatpush1.msra.mxu0 0.0
        %884 = vmatprep.subr.mxu0 0.0
        %885 = vmatpush1.msra.mxu0 0.0
        %886 = vmatprep.subr.mxu0 0.0
        %887 = vmatpush1.msra.mxu0 0.0
        %888 = vmatprep.subr.mxu0 0.0
        %889 = vmatpush1.msra.mxu0 0.0
        %890 = vmatprep.subr.mxu0 0.0
        %891 = vmatpush1.msra.mxu0 0.0
        %892 = vmatprep.subr.mxu0 0.0
        %893 = vmatpush1.msra.mxu0 0.0
        %894 = vmatprep.subr.mxu0 0.0
        %895 = vmatpush1.msra.mxu0 0.0
        %896 = vmatprep.subr.mxu0 0.0
        %897 = vmatpush1.msra.mxu0 0.0
        %898 = vmatprep.subr.mxu0 0.0
        %899 = vmatpush1.msra.mxu0 0.0
        %900 = vmatprep.subr.mxu0 0.0
        %901 = vmatpush1.msra.mxu0 0.0
        %902 = vmatprep.subr.mxu0 0.0
        %903 = vmatpush1.msra.mxu0 0.0
        %904 = vmatprep.subr.mxu0 0.0
        %905 = vmatpush1.msra.mxu0 0.0
        %906 = vmatprep.subr.mxu0 0.0
        %907 = vmatpush1.msra.mxu0 0.0
        %908 = vmatprep.subr.mxu0 0.0
        %909 = vmatpush1.msra.mxu0 0.0
        %910 = vmatprep.subr.mxu0 0.0
        %911 = vmatpush1.msra.mxu0 0.0
        %912 = vmatprep.subr.mxu0 0.0
        %913 = vmatpush1.msra.mxu0 0.0
        %914 = vmatprep.subr.mxu0 0.0
        %915 = vmatpush1.msra.mxu0 0.0
        %916 = vmatprep.subr.mxu0 0.0
        %917 = vmatpush1.msra.mxu0 0.0
        %918 = vmatprep.subr.mxu0 0.0
        %919 = vmatpush1.msra.mxu0 0.0
        %920 = vmatprep.mubr.f32.mxu0 0.0
        %v921 = vand.u32 %v847, 4294901760
        %v922 = vsub.f32 %v847, %v921
        %v923 = vand.u32 %v922, 4294901760
        %v924 = vsub.f32 %v922, %v923
        %v925 = vand.u32 %v924, 4294901760
        %926 = vmatmul.mubr.f32.gmra.mrb[0].mxu0 %v925
        %v927 = vpop.f32.mrb[0].mxu0
        %v928 = vadd.f32 %v838, %v927
        %v929 = vpop.f32.mrb[0].mxu0
        %v930 = vadd.f32 %v842, %v929
        %931 = vmatprep.mubr.f32.mxu0 0.0
        %v932 = vand.u32 %v850, 4294901760
        %v933 = vsub.f32 %v850, %v932
        %v934 = vand.u32 %v933, 4294901760
        %v935 = vsub.f32 %v933, %v934
        %v936 = vand.u32 %v935, 4294901760
        %937 = vmatmul.mubr.f32.gmra.mrb[0].mxu0 %v936
        %v938 = vpop.f32.mrb[0].mxu0
        %v939 = vadd.f32 %v838, %v938
        %v940 = vpop.f32.mrb[0].mxu0
        %v941 = vadd.f32 %v842, %v940
        %942 = vdwg.mxu0
        %v943 = vand.u32 %v830, 4294901760
        %v944 = vsub.f32 %v830, %v943
        %v945 = vand.u32 %v944, 4294901760
        %v946 = vsub.f32 %v944, %v945
        %v947 = vand.u32 %v946, 4294901760
        %948 = vmatprep.subr.mxu0 %v947
        %v949 = vand.u32 %v829, 4294901760
        %v950 = vsub.f32 %v829, %v949
        %v951 = vand.u32 %v950, 4294901760
        %v952 = vsub.f32 %v950, %v951
        %v953 = vand.u32 %v952, 4294901760
        %954 = vmatpush1.msra.mxu0 %v953
        %v955 = vand.u32 %v832, 4294901760
        %v956 = vsub.f32 %v832, %v955
        %v957 = vand.u32 %v956, 4294901760
        %v958 = vsub.f32 %v956, %v957
        %v959 = vand.u32 %v958, 4294901760
        %960 = vmatprep.subr.mxu0 %v959
        %v961 = vand.u32 %v831, 4294901760
        %v962 = vsub.f32 %v831, %v961
        %v963 = vand.u32 %v962, 4294901760
        %v964 = vsub.f32 %v962, %v963
        %v965 = vand.u32 %v964, 4294901760
        %966 = vmatpush1.msra.mxu0 %v965
        %967 = vmatprep.subr.mxu0 0.0
        %968 = vmatpush1.msra.mxu0 0.0
        %969 = vmatprep.subr.mxu0 0.0
        %970 = vmatpush1.msra.mxu0 0.0
        %971 = vmatprep.subr.mxu0 0.0
        %972 = vmatpush1.msra.mxu0 0.0
        %973 = vmatprep.subr.mxu0 0.0
        %974 = vmatpush1.msra.mxu0 0.0
        %975 = vmatprep.subr.mxu0 0.0
        %976 = vmatpush1.msra.mxu0 0.0
        %977 = vmatprep.subr.mxu0 0.0
        %978 = vmatpush1.msra.mxu0 0.0
        %979 = vmatprep.subr.mxu0 0.0
        %980 = vmatpush1.msra.mxu0 0.0
        %981 = vmatprep.subr.mxu0 0.0
        %982 = vmatpush1.msra.mxu0 0.0
        %983 = vmatprep.subr.mxu0 0.0
        %984 = vmatpush1.msra.mxu0 0.0
        %985 = vmatprep.subr.mxu0 0.0
        %986 = vmatpush1.msra.mxu0 0.0
        %987 = vmatprep.subr.mxu0 0.0
        %988 = vmatpush1.msra.mxu0 0.0
        %989 = vmatprep.subr.mxu0 0.0
        %990 = vmatpush1.msra.mxu0 0.0
        %991 = vmatprep.subr.mxu0 0.0
        %992 = vmatpush1.msra.mxu0 0.0
        %993 = vmatprep.subr.mxu0 0.0
        %994 = vmatpush1.msra.mxu0 0.0
        %995 = vmatprep.subr.mxu0 0.0
        %996 = vmatpush1.msra.mxu0 0.0
        %997 = vmatprep.subr.mxu0 0.0
        %998 = vmatpush1.msra.mxu0 0.0
        %999 = vmatprep.subr.mxu0 0.0
        %1000 = vmatpush1.msra.mxu0 0.0
        %1001 = vmatprep.subr.mxu0 0.0
        %1002 = vmatpush1.msra.mxu0 0.0
        %1003 = vmatprep.subr.mxu0 0.0
        %1004 = vmatpush1.msra.mxu0 0.0
        %1005 = vmatprep.subr.mxu0 0.0
        %1006 = vmatpush1.msra.mxu0 0.0
        %1007 = vmatprep.subr.mxu0 0.0
        %1008 = vmatpush1.msra.mxu0 0.0
        %1009 = vmatprep.subr.mxu0 0.0
        %1010 = vmatpush1.msra.mxu0 0.0
        %1011 = vmatprep.subr.mxu0 0.0
        %1012 = vmatpush1.msra.mxu0 0.0
        %1013 = vmatprep.subr.mxu0 0.0
        %1014 = vmatpush1.msra.mxu0 0.0
        %1015 = vmatprep.subr.mxu0 0.0
        %1016 = vmatpush1.msra.mxu0 0.0
        %1017 = vmatprep.subr.mxu0 0.0
        %1018 = vmatpush1.msra.mxu0 0.0
        %1019 = vmatprep.subr.mxu0 0.0
        %1020 = vmatpush1.msra.mxu0 0.0
        %1021 = vmatprep.subr.mxu0 0.0
        %1022 = vmatpush1.msra.mxu0 0.0
        %1023 = vmatprep.subr.mxu0 0.0
        %1024 = vmatpush1.msra.mxu0 0.0
        %1025 = vmatprep.subr.mxu0 0.0
        %1026 = vmatpush1.msra.mxu0 0.0
        %1027 = vmatprep.mubr.f32.mxu0 0.0
        %v1028 = vand.u32 %v847, 4294901760
        %1029 = vmatmul.mubr.f32.gmra.mrb[0].mxu0 %v1028
        %v1030 = vpop.f32.mrb[0].mxu0
        %v1031 = vadd.f32 %v928, %v1030
        %v1032 = vpop.f32.mrb[0].mxu0
        %v1033 = vadd.f32 %v930, %v1032
        %1034 = vmatprep.mubr.f32.mxu0 0.0
        %v1035 = vand.u32 %v850, 4294901760
        %1036 = vmatmul.mubr.f32.gmra.mrb[0].mxu0 %v1035
        %v1037 = vpop.f32.mrb[0].mxu0
        %v1038 = vadd.f32 %v939, %v1037
        %v1039 = vpop.f32.mrb[0].mxu0
        %v1040 = vadd.f32 %v941, %v1039
        %1041 = vdwg.mxu0
        %v1042 = vand.u32 %v830, 4294901760
        %v1043 = vsub.f32 %v830, %v1042
        %1044 = vmatprep.subr.mxu0 %v1043
        %v1045 = vand.u32 %v829, 4294901760
        %v1046 = vsub.f32 %v829, %v1045
        %1047 = vmatpush1.msra.mxu0 %v1046
        %v1048 = vand.u32 %v832, 4294901760
        %v1049 = vsub.f32 %v832, %v1048
        %1050 = vmatprep.subr.mxu0 %v1049
        %v1051 = vand.u32 %v831, 4294901760
        %v1052 = vsub.f32 %v831, %v1051
        %1053 = vmatpush1.msra.mxu0 %v1052
        %1054 = vmatprep.subr.mxu0 0.0
        %1055 = vmatpush1.msra.mxu0 0.0
        %1056 = vmatprep.subr.mxu0 0.0
        %1057 = vmatpush1.msra.mxu0 0.0
        %1058 = vmatprep.subr.mxu0 0.0
        %1059 = vmatpush1.msra.mxu0 0.0
        %1060 = vmatprep.subr.mxu0 0.0
        %1061 = vmatpush1.msra.mxu0 0.0
        %1062 = vmatprep.subr.mxu0 0.0
        %1063 = vmatpush1.msra.mxu0 0.0
        %1064 = vmatprep.subr.mxu0 0.0
        %1065 = vmatpush1.msra.mxu0 0.0
        %1066 = vmatprep.subr.mxu0 0.0
        %1067 = vmatpush1.msra.mxu0 0.0
        %1068 = vmatprep.subr.mxu0 0.0
        %1069 = vmatpush1.msra.mxu0 0.0
        %1070 = vmatprep.subr.mxu0 0.0
        %1071 = vmatpush1.msra.mxu0 0.0
        %1072 = vmatprep.subr.mxu0 0.0
        %1073 = vmatpush1.msra.mxu0 0.0
        %1074 = vmatprep.subr.mxu0 0.0
        %1075 = vmatpush1.msra.mxu0 0.0
        %1076 = vmatprep.subr.mxu0 0.0
        %1077 = vmatpush1.msra.mxu0 0.0
        %1078 = vmatprep.subr.mxu0 0.0
        %1079 = vmatpush1.msra.mxu0 0.0
        %1080 = vmatprep.subr.mxu0 0.0
        %1081 = vmatpush1.msra.mxu0 0.0
        %1082 = vmatprep.subr.mxu0 0.0
        %1083 = vmatpush1.msra.mxu0 0.0
        %1084 = vmatprep.subr.mxu0 0.0
        %1085 = vmatpush1.msra.mxu0 0.0
        %1086 = vmatprep.subr.mxu0 0.0
        %1087 = vmatpush1.msra.mxu0 0.0
        %1088 = vmatprep.subr.mxu0 0.0
        %1089 = vmatpush1.msra.mxu0 0.0
        %1090 = vmatprep.subr.mxu0 0.0
        %1091 = vmatpush1.msra.mxu0 0.0
        %1092 = vmatprep.subr.mxu0 0.0
        %1093 = vmatpush1.msra.mxu0 0.0
        %1094 = vmatprep.subr.mxu0 0.0
        %1095 = vmatpush1.msra.mxu0 0.0
        %1096 = vmatprep.subr.mxu0 0.0
        %1097 = vmatpush1.msra.mxu0 0.0
        %1098 = vmatprep.subr.mxu0 0.0
        %1099 = vmatpush1.msra.mxu0 0.0
        %1100 = vmatprep.subr.mxu0 0.0
        %1101 = vmatpush1.msra.mxu0 0.0
        %1102 = vmatprep.subr.mxu0 0.0
        %1103 = vmatpush1.msra.mxu0 0.0
        %1104 = vmatprep.subr.mxu0 0.0
        %1105 = vmatpush1.msra.mxu0 0.0
        %1106 = vmatprep.subr.mxu0 0.0
        %1107 = vmatpush1.msra.mxu0 0.0
        %1108 = vmatprep.subr.mxu0 0.0
        %1109 = vmatpush1.msra.mxu0 0.0
        %1110 = vmatprep.subr.mxu0 0.0
        %1111 = vmatpush1.msra.mxu0 0.0
        %1112 = vmatprep.subr.mxu0 0.0
        %1113 = vmatpush1.msra.mxu0 0.0
        %1114 = vmatprep.mubr.f32.mxu0 0.0
        %v1115 = vand.u32 %v847, 4294901760
        %v1116 = vsub.f32 %v847, %v1115
        %1117 = vmatmul.mubr.f32.gmra.mrb[0].mxu0 %v1116
        %v1118 = vpop.f32.mrb[0].mxu0
        %v1119 = vadd.f32 %v1031, %v1118
        %v1120 = vpop.f32.mrb[0].mxu0
        %v1121 = vadd.f32 %v1033, %v1120
        %1122 = vmatprep.mubr.f32.mxu0 0.0
        %v1123 = vand.u32 %v850, 4294901760
        %v1124 = vsub.f32 %v850, %v1123
        %1125 = vmatmul.mubr.f32.gmra.mrb[0].mxu0 %v1124
        %v1126 = vpop.f32.mrb[0].mxu0
        %v1127 = vadd.f32 %v1038, %v1126
        %v1128 = vpop.f32.mrb[0].mxu0
        %v1129 = vadd.f32 %v1040, %v1128
        %1130 = vdwg.mxu0
        %v1131 = vand.u32 %v830, 4294901760
        %1132 = vmatprep.subr.mxu0 %v1131
        %v1133 = vand.u32 %v829, 4294901760
        %1134 = vmatpush1.msra.mxu0 %v1133
        %v1135 = vand.u32 %v832, 4294901760
        %1136 = vmatprep.subr.mxu0 %v1135
        %v1137 = vand.u32 %v831, 4294901760
        %1138 = vmatpush1.msra.mxu0 %v1137
        %1139 = vmatprep.subr.mxu0 0.0
        %1140 = vmatpush1.msra.mxu0 0.0
        %1141 = vmatprep.subr.mxu0 0.0
        %1142 = vmatpush1.msra.mxu0 0.0
        %1143 = vmatprep.subr.mxu0 0.0
        %1144 = vmatpush1.msra.mxu0 0.0
        %1145 = vmatprep.subr.mxu0 0.0
        %1146 = vmatpush1.msra.mxu0 0.0
        %1147 = vmatprep.subr.mxu0 0.0
        %1148 = vmatpush1.msra.mxu0 0.0
        %1149 = vmatprep.subr.mxu0 0.0
        %1150 = vmatpush1.msra.mxu0 0.0
        %1151 = vmatprep.subr.mxu0 0.0
        %1152 = vmatpush1.msra.mxu0 0.0
        %1153 = vmatprep.subr.mxu0 0.0
        %1154 = vmatpush1.msra.mxu0 0.0
        %1155 = vmatprep.subr.mxu0 0.0
        %1156 = vmatpush1.msra.mxu0 0.0
        %1157 = vmatprep.subr.mxu0 0.0
        %1158 = vmatpush1.msra.mxu0 0.0
        %1159 = vmatprep.subr.mxu0 0.0
        %1160 = vmatpush1.msra.mxu0 0.0
        %1161 = vmatprep.subr.mxu0 0.0
        %1162 = vmatpush1.msra.mxu0 0.0
        %1163 = vmatprep.subr.mxu0 0.0
        %1164 = vmatpush1.msra.mxu0 0.0
        %1165 = vmatprep.subr.mxu0 0.0
        %1166 = vmatpush1.msra.mxu0 0.0
        %1167 = vmatprep.subr.mxu0 0.0
        %1168 = vmatpush1.msra.mxu0 0.0
        %1169 = vmatprep.subr.mxu0 0.0
        %1170 = vmatpush1.msra.mxu0 0.0
        %1171 = vmatprep.subr.mxu0 0.0
        %1172 = vmatpush1.msra.mxu0 0.0
        %1173 = vmatprep.subr.mxu0 0.0
        %1174 = vmatpush1.msra.mxu0 0.0
        %1175 = vmatprep.subr.mxu0 0.0
        %1176 = vmatpush1.msra.mxu0 0.0
        %1177 = vmatprep.subr.mxu0 0.0
        %1178 = vmatpush1.msra.mxu0 0.0
        %1179 = vmatprep.subr.mxu0 0.0
        %1180 = vmatpush1.msra.mxu0 0.0
        %1181 = vmatprep.subr.mxu0 0.0
        %1182 = vmatpush1.msra.mxu0 0.0
        %1183 = vmatprep.subr.mxu0 0.0
        %1184 = vmatpush1.msra.mxu0 0.0
        %1185 = vmatprep.subr.mxu0 0.0
        %1186 = vmatpush1.msra.mxu0 0.0
        %1187 = vmatprep.subr.mxu0 0.0
        %1188 = vmatpush1.msra.mxu0 0.0
        %1189 = vmatprep.subr.mxu0 0.0
        %1190 = vmatpush1.msra.mxu0 0.0
        %1191 = vmatprep.subr.mxu0 0.0
        %1192 = vmatpush1.msra.mxu0 0.0
        %1193 = vmatprep.subr.mxu0 0.0
        %1194 = vmatpush1.msra.mxu0 0.0
        %1195 = vmatprep.subr.mxu0 0.0
        %1196 = vmatpush1.msra.mxu0 0.0
        %1197 = vmatprep.subr.mxu0 0.0
        %1198 = vmatpush1.msra.mxu0 0.0
        %1199 = vmatprep.mubr.f32.mxu0 0.0
        %v1200 = vand.u32 %v847, 4294901760
        %v1201 = vsub.f32 %v847, %v1200
        %v1202 = vand.u32 %v1201, 4294901760
        %1203 = vmatmul.mubr.f32.gmra.mrb[0].mxu0 %v1202
        %v1204 = vpop.f32.mrb[0].mxu0
        %v1205 = vadd.f32 %v1119, %v1204
        %v1206 = vpop.f32.mrb[0].mxu0
        %v1207 = vadd.f32 %v1121, %v1206
        %1208 = vmatprep.mubr.f32.mxu0 0.0
        %v1209 = vand.u32 %v850, 4294901760
        %v1210 = vsub.f32 %v850, %v1209
        %v1211 = vand.u32 %v1210, 4294901760
        %1212 = vmatmul.mubr.f32.gmra.mrb[0].mxu0 %v1211
        %v1213 = vpop.f32.mrb[0].mxu0
        %v1214 = vadd.f32 %v1127, %v1213
        %v1215 = vpop.f32.mrb[0].mxu0
        %v1216 = vadd.f32 %v1129, %v1215
        %1217 = vdwg.mxu0
        %v1218 = vand.u32 %v830, 4294901760
        %v1219 = vsub.f32 %v830, %v1218
        %v1220 = vand.u32 %v1219, 4294901760
        %1221 = vmatprep.subr.mxu0 %v1220
        %v1222 = vand.u32 %v829, 4294901760
        %v1223 = vsub.f32 %v829, %v1222
        %v1224 = vand.u32 %v1223, 4294901760
        %1225 = vmatpush1.msra.mxu0 %v1224
        %v1226 = vand.u32 %v832, 4294901760
        %v1227 = vsub.f32 %v832, %v1226
        %v1228 = vand.u32 %v1227, 4294901760
        %1229 = vmatprep.subr.mxu0 %v1228
        %v1230 = vand.u32 %v831, 4294901760
        %v1231 = vsub.f32 %v831, %v1230
        %v1232 = vand.u32 %v1231, 4294901760
        %1233 = vmatpush1.msra.mxu0 %v1232
        %1234 = vmatprep.subr.mxu0 0.0
        %1235 = vmatpush1.msra.mxu0 0.0
        %1236 = vmatprep.subr.mxu0 0.0
        %1237 = vmatpush1.msra.mxu0 0.0
        %1238 = vmatprep.subr.mxu0 0.0
        %1239 = vmatpush1.msra.mxu0 0.0
        %1240 = vmatprep.subr.mxu0 0.0
        %1241 = vmatpush1.msra.mxu0 0.0
        %1242 = vmatprep.subr.mxu0 0.0
        %1243 = vmatpush1.msra.mxu0 0.0
        %1244 = vmatprep.subr.mxu0 0.0
        %1245 = vmatpush1.msra.mxu0 0.0
        %1246 = vmatprep.subr.mxu0 0.0
        %1247 = vmatpush1.msra.mxu0 0.0
        %1248 = vmatprep.subr.mxu0 0.0
        %1249 = vmatpush1.msra.mxu0 0.0
        %1250 = vmatprep.subr.mxu0 0.0
        %1251 = vmatpush1.msra.mxu0 0.0
        %1252 = vmatprep.subr.mxu0 0.0
        %1253 = vmatpush1.msra.mxu0 0.0
        %1254 = vmatprep.subr.mxu0 0.0
        %1255 = vmatpush1.msra.mxu0 0.0
        %1256 = vmatprep.subr.mxu0 0.0
        %1257 = vmatpush1.msra.mxu0 0.0
        %1258 = vmatprep.subr.mxu0 0.0
        %1259 = vmatpush1.msra.mxu0 0.0
        %1260 = vmatprep.subr.mxu0 0.0
        %1261 = vmatpush1.msra.mxu0 0.0
        %1262 = vmatprep.subr.mxu0 0.0
        %1263 = vmatpush1.msra.mxu0 0.0
        %1264 = vmatprep.subr.mxu0 0.0
        %1265 = vmatpush1.msra.mxu0 0.0
        %1266 = vmatprep.subr.mxu0 0.0
        %1267 = vmatpush1.msra.mxu0 0.0
        %1268 = vmatprep.subr.mxu0 0.0
        %1269 = vmatpush1.msra.mxu0 0.0
        %1270 = vmatprep.subr.mxu0 0.0
        %1271 = vmatpush1.msra.mxu0 0.0
        %1272 = vmatprep.subr.mxu0 0.0
        %1273 = vmatpush1.msra.mxu0 0.0
        %1274 = vmatprep.subr.mxu0 0.0
        %1275 = vmatpush1.msra.mxu0 0.0
        %1276 = vmatprep.subr.mxu0 0.0
        %1277 = vmatpush1.msra.mxu0 0.0
        %1278 = vmatprep.subr.mxu0 0.0
        %1279 = vmatpush1.msra.mxu0 0.0
        %1280 = vmatprep.subr.mxu0 0.0
        %1281 = vmatpush1.msra.mxu0 0.0
        %1282 = vmatprep.subr.mxu0 0.0
        %1283 = vmatpush1.msra.mxu0 0.0
        %1284 = vmatprep.subr.mxu0 0.0
        %1285 = vmatpush1.msra.mxu0 0.0
        %1286 = vmatprep.subr.mxu0 0.0
        %1287 = vmatpush1.msra.mxu0 0.0
        %1288 = vmatprep.subr.mxu0 0.0
        %1289 = vmatpush1.msra.mxu0 0.0
        %1290 = vmatprep.subr.mxu0 0.0
        %1291 = vmatpush1.msra.mxu0 0.0
        %1292 = vmatprep.subr.mxu0 0.0
        %1293 = vmatpush1.msra.mxu0 0.0
        %1294 = vmatprep.mubr.f32.mxu0 0.0
        %v1295 = vand.u32 %v847, 4294901760
        %1296 = vmatmul.mubr.f32.gmra.mrb[0].mxu0 %v1295
        %v1297 = vpop.f32.mrb[0].mxu0
        %v1298 = vadd.f32 %v1205, %v1297
        %v1299 = vpop.f32.mrb[0].mxu0
        %v1300 = vadd.f32 %v1207, %v1299
        %1301 = vmatprep.mubr.f32.mxu0 0.0
        %v1302 = vand.u32 %v850, 4294901760
        %1303 = vmatmul.mubr.f32.gmra.mrb[0].mxu0 %v1302
        %v1304 = vpop.f32.mrb[0].mxu0
        %v1305 = vadd.f32 %v1214, %v1304
        %v1306 = vpop.f32.mrb[0].mxu0
        %v1307 = vadd.f32 %v1216, %v1306
        %1308 = vdwg.mxu0
        %v1309 = vand.u32 %v830, 4294901760
        %1310 = vmatprep.subr.mxu0 %v1309
        %v1311 = vand.u32 %v829, 4294901760
        %1312 = vmatpush1.msra.mxu0 %v1311
        %v1313 = vand.u32 %v832, 4294901760
        %1314 = vmatprep.subr.mxu0 %v1313
        %v1315 = vand.u32 %v831, 4294901760
        %1316 = vmatpush1.msra.mxu0 %v1315
        %1317 = vmatprep.subr.mxu0 0.0
        %1318 = vmatpush1.msra.mxu0 0.0
        %1319 = vmatprep.subr.mxu0 0.0
        %1320 = vmatpush1.msra.mxu0 0.0
        %1321 = vmatprep.subr.mxu0 0.0
        %1322 = vmatpush1.msra.mxu0 0.0
        %1323 = vmatprep.subr.mxu0 0.0
        %1324 = vmatpush1.msra.mxu0 0.0
        %1325 = vmatprep.subr.mxu0 0.0
        %1326 = vmatpush1.msra.mxu0 0.0
        %1327 = vmatprep.subr.mxu0 0.0
        %1328 = vmatpush1.msra.mxu0 0.0
        %1329 = vmatprep.subr.mxu0 0.0
        %1330 = vmatpush1.msra.mxu0 0.0
        %1331 = vmatprep.subr.mxu0 0.0
        %1332 = vmatpush1.msra.mxu0 0.0
        %1333 = vmatprep.subr.mxu0 0.0
        %1334 = vmatpush1.msra.mxu0 0.0
        %1335 = vmatprep.subr.mxu0 0.0
        %1336 = vmatpush1.msra.mxu0 0.0
        %1337 = vmatprep.subr.mxu0 0.0
        %1338 = vmatpush1.msra.mxu0 0.0
        %1339 = vmatprep.subr.mxu0 0.0
        %1340 = vmatpush1.msra.mxu0 0.0
        %1341 = vmatprep.subr.mxu0 0.0
        %1342 = vmatpush1.msra.mxu0 0.0
        %1343 = vmatprep.subr.mxu0 0.0
        %1344 = vmatpush1.msra.mxu0 0.0
        %1345 = vmatprep.subr.mxu0 0.0
        %1346 = vmatpush1.msra.mxu0 0.0
        %1347 = vmatprep.subr.mxu0 0.0
        %1348 = vmatpush1.msra.mxu0 0.0
        %1349 = vmatprep.subr.mxu0 0.0
        %1350 = vmatpush1.msra.mxu0 0.0
        %1351 = vmatprep.subr.mxu0 0.0
        %1352 = vmatpush1.msra.mxu0 0.0
        %1353 = vmatprep.subr.mxu0 0.0
        %1354 = vmatpush1.msra.mxu0 0.0
        %1355 = vmatprep.subr.mxu0 0.0
        %1356 = vmatpush1.msra.mxu0 0.0
        %1357 = vmatprep.subr.mxu0 0.0
        %1358 = vmatpush1.msra.mxu0 0.0
        %1359 = vmatprep.subr.mxu0 0.0
        %1360 = vmatpush1.msra.mxu0 0.0
        %1361 = vmatprep.subr.mxu0 0.0
        %1362 = vmatpush1.msra.mxu0 0.0
        %1363 = vmatprep.subr.mxu0 0.0
        %1364 = vmatpush1.msra.mxu0 0.0
        %1365 = vmatprep.subr.mxu0 0.0
        %1366 = vmatpush1.msra.mxu0 0.0
        %1367 = vmatprep.subr.mxu0 0.0
        %1368 = vmatpush1.msra.mxu0 0.0
        %1369 = vmatprep.subr.mxu0 0.0
        %1370 = vmatpush1.msra.mxu0 0.0
        %1371 = vmatprep.subr.mxu0 0.0
        %1372 = vmatpush1.msra.mxu0 0.0
        %1373 = vmatprep.subr.mxu0 0.0
        %1374 = vmatpush1.msra.mxu0 0.0
        %1375 = vmatprep.subr.mxu0 0.0
        %1376 = vmatpush1.msra.mxu0 0.0
        %1377 = vmatprep.mubr.f32.mxu0 0.0
        %v1378 = vand.u32 %v847, 4294901760
        %1379 = vmatmul.mubr.f32.gmra.mrb[0].mxu0 %v1378
        %v1380 = vpop.f32.mrb[0].mxu0
        %v1381 = vadd.f32 %v1298, %v1380
        %v1382 = vpop.f32.mrb[0].mxu0
        %v1383 = vadd.f32 %v1300, %v1382
        %1384 = vmatprep.mubr.f32.mxu0 0.0
        %v1385 = vand.u32 %v850, 4294901760
        %1386 = vmatmul.mubr.f32.gmra.mrb[0].mxu0 %v1385
        %v1387 = vpop.f32.mrb[0].mxu0
        %v1388 = vadd.f32 %v1305, %v1387
        %v1389 = vpop.f32.mrb[0].mxu0
        %v1390 = vadd.f32 %v1307, %v1389
        %1391 = vdwg.mxu0
        %v1392 = vmul.f32 %v1381, 0.2
        %v1393 = vmul.f32 %v1383, 0.2
        %v1394 = vmul.f32 %v1388, 0.2
        %v1395 = vmul.f32 %v1390, 0.2
        %v1396 = vmax.f32 %v1381, %v1392
        %v1397 = vmax.f32 %v1383, %v1393
        %v1398 = vmax.f32 %v1388, %v1394
        %v1399 = vmax.f32 %v1390, %v1395
        %v1400 = vxor.u32 %v1396, 2147483648
        %v1401 = vxor.u32 %v1398, 2147483648
        %v1402 = vmul.f32 %v1400, 1.442695
        %v1403 = vpow.pop %v1402
        %v1404 = vmul.f32 %v1401, 1.442695
        %v1405 = vpow.pop %v1404
        %v1406 = vadd.f32 %v1403, 1.0
        %v1407 = vadd.f32 %v1405, 1.0
        %v1408 = vrcp.pop %v1406
        %v1409 = vmul.f32 1.0, %v1408
        %v1410 = vrcp.pop %v1407
        %v1411 = vmul.f32 1.0, %v1410
        %v1412 = vmul.f32 %v825, %v1409
        %v1413 = vmul.f32 %v826, %v1411
        %v1414 = vadd.f32 %v1412, %v1397
        %v1415 = vadd.f32 %v1413, %v1399
        %1416 = vst [vmem:[%s261] sm:$0xff] %v1414
        %1417 = vst [vmem:[%s261 + $0x8] sm:$0xff] %v1415
        %s1418 = sand.u32 %s164, 1
        %s1419 = scalar_lea.sflag [#allocation3], %s1418
        %s1420 = sand.u32 %s164, 1
        %s1421 = smul.addr %s1420, 16
        %s1422 = scalar_lea.vmem [#allocation2], %s1421
        // Predicated region
        $region45: #{fwd.1} parent=43 // pred_check
          %p1423 = pneg %p174
        $region46: #{fwd.1} parent=43 // pred_check_branch
          %1425 = sbr.rel (%p1423) target = $region48
        $region47: #{fwd.1} parent=43 // pred_region
          %s1426 = smul.u32 2, %s20
          %s1428 = ssub.s32 256, 256
          %1429 = vsyncadd %s1419, %s1428
          %s1430 = smul.addr %s1426, 128
          %s1431 = scalar_lea.hbm %s6, %s1430
          %s1432 = sshll.u32 %s1422, 4
          %s1433 = int_to_ptr.vmem [resolvable:$true] %s1432
          %1438 = dma.vmem_to_hbm [thread:$0]  %s1433, 256, %s1431, %s1419, 128, 128, 8
        $region48: #{fwd.1} parent=43 // pred_fallthru
          _
      $region44: #{fwd.1} parent=5 // pred_fallthru
        _
      %p1439 = scmp.le.s32.totalorder 2, %s15
      // Predicated region
      $region49: #{fwd.1} parent=5 // pred_check
        %p1440 = pneg %p1439
      $region50: #{fwd.1} parent=5 // pred_check_branch
        %1442 = sbr.rel (%p1440) target = $region52
      $region51: #{fwd.1} parent=5 // pred_region
        %s1443 = ssub.s32 %s15, 2
        // Predicated region
        $region53: #{fwd.1} parent=51 // pred_check
          %p1444 = pneg %p180
        $region54: #{fwd.1} parent=51 // pred_check_branch
          %1446 = sbr.rel (%p1444) target = $region56
        $region55: #{fwd.1} parent=51 // pred_region
          %s1447 = sand.u32 %s165, 1
          %s1448 = scalar_lea.sflag [#allocation3], %s1447
          %s1449 = sand.u32 %s165, 1
          %s1450 = smul.addr %s1449, 16
          %s1451 = scalar_lea.vmem [#allocation2], %s1450
          %1452 = dma.done %s1448, 256
        $region56: #{fwd.1} parent=51 // pred_fallthru
          _
      $region52: #{fwd.1} parent=5 // pred_fallthru
        _
    $region6: #{fwd.1} parent=1 // loop_footer
      %s19 = sadd.s32 1, %s15
    $region7: #{fwd.1} parent=1 // loop_footer_branch
      %14 = sbr.rel target = $region3
    $region8: #{fwd.1} parent=1 // loop_exit
      _
    %1453 = vsyncpa [#allocation3], 1
    %s1454 = scalar_lea.sflag [#allocation3], 1
    %1455 = vsyncpa %s1454, 1

</llo_original>
